<compile_context>
chip_gen: v7x
topology: tpu7x:2x2x1
jax: 0.10.0
libtpu: 0.0.40
codegen_flags: <defaults>
</compile_context>

<pallas_src>
import jax
import jax.numpy as jnp
import numpy as np
from jax import lax
from jax.experimental import pallas as pl
from jax.experimental.pallas import tpu as pltpu

# ----------------------------- hyper-params (small, synthetic) ---------------
SR = 16000
N_FFT = 256
HOP = 128                       # N_FFT == 2 * HOP is assumed by the framing trick
N_FREQ = 128                    # Nyquist bin dropped -> exact 128-lane tiling
N_MELS = 64                     # real mel filters
N_MELS_PAD = 128                # lane-dense padded mel count (zero filters)
C1, C2, C3 = 128, 128, 256      # encoder channels
EMB = 128                       # decoder embedding size
NUM_CLASSES = 7                 # len(labels)
CLS_PAD = 128                   # pad classifier output to lane-dense 128 cols


# ----------------------------- the fused kernel -------------------------------
def _speakernet_kernel(lens_ref,
                       audio_ref, cossin_ref, fbank_ref,
                       w1_ref, b1_ref, w2_ref, b2_ref, w3_ref, b3_ref,
                       wemb_ref, bemb_ref, wcls_ref, bcls_ref,
                       logits_ref, emb_ref):
    b = pl.program_id(0)
    T = audio_ref.shape[0] - 1                    # frames in this (padded) utterance

    # ---- valid-frame mask for this utterance (length-aware norm / pooling) ----
    n = lens_ref[b]                               # valid frame count (SMEM scalar)
    nf = n.astype(jnp.float32)
    inv_n = 1.0 / nf
    inv_nm1 = 1.0 / (nf - 1.0)
    row = lax.broadcasted_iota(jnp.int32, (T, 1), 0)
    maskf = (row < n).astype(jnp.float32)         # (T, 1)

    # ---------------- preprocessor ----------------
    chunks = audio_ref[...]                                           # (T+1, HOP) f32
    frames = jnp.concatenate([chunks[:-1, :], chunks[1:, :]], axis=-1)  # (T, N_FFT)
    rei = jnp.dot(frames.astype(jnp.bfloat16), cossin_ref[...],
                  preferred_element_type=jnp.float32)                 # (T, 2*N_FREQ)
    re = rei[:, :N_FREQ]
    im = rei[:, N_FREQ:]
    power = re * re + im * im                                         # (T, N_FREQ) f32
    logmel = jnp.log(jnp.dot(power.astype(jnp.bfloat16), fbank_ref[...],
                             preferred_element_type=jnp.float32) + 1e-6)  # (T, M_PAD)

    # per-feature normalization over valid frames only
    mean = jnp.sum(logmel * maskf, axis=0, keepdims=True) * inv_n
    diff = (logmel - mean) * maskf
    var = jnp.sum(diff * diff, axis=0, keepdims=True) * inv_nm1
    inv_std = pl.reciprocal(jnp.sqrt(var) + 1e-5)                     # (1, M_PAD)
    x = (diff * inv_std).astype(jnp.bfloat16)                         # masked, bf16 once

    # ---------------- encoder ----------------
    def conv3_bn_relu(xb, w_ref, b_ref):
        # xb: (T, Cin) bf16 ; w_ref: (3, Cin, Cout) bf16 (BN scale folded)
        t, cin = xb.shape
        z = jnp.zeros((1, cin), jnp.bfloat16)
        x_prev = jnp.concatenate([z, xb[:t - 1, :]], axis=0)          # x[t-1] (zero pad)
        x_next = jnp.concatenate([xb[1:, :], z], axis=0)              # x[t+1] (zero pad)
        acc = jnp.dot(x_prev, w_ref[0], preferred_element_type=jnp.float32)
        acc = acc + jnp.dot(xb, w_ref[1], preferred_element_type=jnp.float32)
        acc = acc + jnp.dot(x_next, w_ref[2], preferred_element_type=jnp.float32)
        y = jnp.maximum(acc + b_ref[...], 0.0) * maskf                # re-zero pad frames
        return y.astype(jnp.bfloat16)

    x = conv3_bn_relu(x, w1_ref, b1_ref)                              # (T, C1) bf16
    x = conv3_bn_relu(x, w2_ref, b2_ref)                              # (T, C2) bf16
    x3 = jnp.maximum(
        jnp.dot(x, w3_ref[...], preferred_element_type=jnp.float32)
        + b3_ref[...], 0.0) * maskf                                   # (T, C3) f32

    # ---------------- decoder ----------------
    mu = jnp.sum(x3, axis=0, keepdims=True) * inv_n                   # (1, C3)
    d = (x3 - mu) * maskf
    var_t = jnp.sum(d * d, axis=0, keepdims=True) * inv_nm1
    pooled = jnp.concatenate([mu, jnp.sqrt(var_t)], axis=-1)          # (1, 2*C3)
    emb = jnp.dot(pooled.astype(jnp.bfloat16), wemb_ref[...],
                  preferred_element_type=jnp.float32) + bemb_ref[...]      # (1, EMB)
    logits = jnp.dot(emb.astype(jnp.bfloat16), wcls_ref[...],
                     preferred_element_type=jnp.float32) + bcls_ref[...]   # (1, CLS_PAD)

    emb_ref[...] = emb.astype(emb_ref.dtype)
    logits_ref[...] = logits.astype(logits_ref.dtype)


# ----------------------------- wrapper ----------------------------------------
def _const_spec(shape):
    nd = len(shape)
    return pl.BlockSpec(shape, lambda b, lens, _nd=nd: (0,) * _nd)


@jax.jit
def forward(audio, lengths, params):
    B, N = audio.shape
    assert N % HOP == 0 and N_FFT == 2 * HOP
    nchunk = N // HOP
    T = nchunk - 1
    audio3 = audio.reshape(B, nchunk, HOP).astype(jnp.float32)
    feat_lens = (lengths // HOP - (N_FFT // HOP) + 1).astype(jnp.int32)   # valid frames

    weights = (
        params["cossin"], params["fbank"],
        params["w1"], params["b1"], params["w2"], params["b2"],
        params["w3"], params["b3"],
        params["w_emb"], params["b_emb"], params["w_cls"], params["b_cls"],
    )

    flops = B * (2 * T * (N_FFT * 2 * N_FREQ + N_FREQ * N_MELS_PAD
                          + 3 * N_MELS_PAD * C1 + 3 * C1 * C2 + C2 * C3)
                 + 2 * (2 * C3 * EMB + EMB * CLS_PAD))
    transcendentals = B * (T * N_MELS_PAD + 3 * N_MELS_PAD + C3)
    bytes_accessed = int(
        int(np.prod(audio3.shape)) * 4
        + sum(int(np.prod(w.shape)) * jnp.dtype(w.dtype).itemsize for w in weights)
        + B * (CLS_PAD + EMB) * 4)

    grid_spec = pltpu.PrefetchScalarGridSpec(
        num_scalar_prefetch=1,                      # feat_lens -> SMEM
        grid=(B,),
        in_specs=[
            pl.BlockSpec((None, nchunk, HOP), lambda b, lens: (b, 0, 0)),
            *[_const_spec(w.shape) for w in weights],
        ],
        out_specs=(
            pl.BlockSpec((None, 1, CLS_PAD), lambda b, lens: (b, 0, 0)),
            pl.BlockSpec((None, 1, EMB), lambda b, lens: (b, 0, 0)),
        ),
    )
    out_shapes = (
        jax.ShapeDtypeStruct((B, 1, CLS_PAD), jnp.float32),   # lane-dense padded logits
        jax.ShapeDtypeStruct((B, 1, EMB), jnp.float32),
    )
    logits_pad, emb = pl.pallas_call(
        _speakernet_kernel,
        out_shape=out_shapes,
        grid_spec=grid_spec,
        compiler_params=pltpu.CompilerParams(
            dimension_semantics=("parallel",)),
        cost_estimate=pl.CostEstimate(
            flops=flops, transcendentals=transcendentals,
            bytes_accessed=bytes_accessed),
    )(feat_lens, audio3, *weights)

    logits = logits_pad.reshape(B, CLS_PAD)[:, :NUM_CLASSES]
    return logits, emb.reshape(B, EMB), feat_lens


# ----------------------------- constants & parameters --------------------------
def make_preprocessor_constants():
    # windowed DFT folded into one (N_FFT, 2*N_FREQ) matrix: [win*cos | win*sin]
    n = np.arange(N_FFT)[:, None]
    k = np.arange(N_FREQ)[None, :]
    ang = 2.0 * np.pi * n * k / N_FFT
    window = 0.5 - 0.5 * np.cos(2.0 * np.pi * np.arange(N_FFT) / N_FFT)
    cos_w = (window[:, None] * np.cos(ang)).astype(np.float32)
    sin_w = (window[:, None] * np.sin(ang)).astype(np.float32)
    cossin = np.concatenate([cos_w, sin_w], axis=1)

    # mel filterbank over 128 freq bins, padded to 128 lane-dense output columns
    def hz_to_mel(f): return 2595.0 * np.log10(1.0 + f / 700.0)
    def mel_to_hz(m): return 700.0 * (10.0 ** (m / 2595.0) - 1.0)
    mels = np.linspace(hz_to_mel(0.0), hz_to_mel(SR / 2.0), N_MELS + 2)
    bins = np.floor((N_FFT + 1) * mel_to_hz(mels) / SR).astype(int)
    fb = np.zeros((N_FREQ, N_MELS_PAD), np.float32)   # cols >= N_MELS stay zero
    for m in range(N_MELS):
        l, c, r = bins[m], bins[m + 1], bins[m + 2]
        for kk in range(l, min(c, N_FREQ)):
            if c > l:
                fb[kk, m] = (kk - l) / (c - l)
        for kk in range(c, min(r, N_FREQ)):
            if r > c:
                fb[kk, m] = (r - kk) / (r - c)
    return (jnp.asarray(cossin).astype(jnp.bfloat16),
            jnp.asarray(fb).astype(jnp.bfloat16))


def init_params(key):
    ks = jax.random.split(key, 12)
    w1 = jax.random.normal(ks[0], (3, N_MELS, C1), jnp.float32) * 0.05
    s1 = 1.0 + 0.1 * jax.random.normal(ks[1], (C1,), jnp.float32)
    b1 = 0.1 * jax.random.normal(ks[2], (C1,), jnp.float32)
    w2 = jax.random.normal(ks[3], (3, C1, C2), jnp.float32) * 0.05
    s2 = 1.0 + 0.1 * jax.random.normal(ks[4], (C2,), jnp.float32)
    b2 = 0.1 * jax.random.normal(ks[5], (C2,), jnp.float32)
    w3 = jax.random.normal(ks[6], (1, C2, C3), jnp.float32) * 0.05
    s3 = 1.0 + 0.1 * jax.random.normal(ks[7], (C3,), jnp.float32)
    b3 = 0.1 * jax.random.normal(ks[8], (C3,), jnp.float32)
    w_emb = jax.random.normal(ks[9], (2 * C3, EMB), jnp.float32) * 0.05
    b_emb = jnp.zeros((EMB,), jnp.float32)
    w_cls = jax.random.normal(ks[10], (EMB, NUM_CLASSES), jnp.float32) * 0.05
    b_cls = jnp.zeros((NUM_CLASSES,), jnp.float32)

    cossin, fbank = make_preprocessor_constants()

    # fold BN scales into conv weights, pad w1's input dim to the lane-padded mel
    # count (zero rows contribute nothing), pad classifier to 128 cols, cast bf16.
    w1_pad = jnp.zeros((3, N_MELS_PAD, C1), jnp.float32).at[:, :N_MELS, :].set(w1)
    w_cls_pad = jnp.zeros((EMB, CLS_PAD), jnp.float32).at[:, :NUM_CLASSES].set(w_cls)
    b_cls_pad = jnp.zeros((CLS_PAD,), jnp.float32).at[:NUM_CLASSES].set(b_cls)

    return dict(
        cossin=cossin, fbank=fbank,
        w1=(w1_pad * s1[None, None, :]).astype(jnp.bfloat16), b1=b1.reshape(1, C1),
        w2=(w2 * s2[None, None, :]).astype(jnp.bfloat16), b2=b2.reshape(1, C2),
        w3=(w3.reshape(C2, C3) * s3[None, :]).astype(jnp.bfloat16), b3=b3.reshape(1, C3),
        w_emb=w_emb.astype(jnp.bfloat16), b_emb=b_emb.reshape(1, EMB),
        w_cls=w_cls_pad.astype(jnp.bfloat16), b_cls=b_cls_pad.reshape(1, CLS_PAD),
    )


# ----------------------------- main --------------------------------------------
if __name__ == "__main__":
    key = jax.random.PRNGKey(0)
    k_audio, k_params = jax.random.split(key)

    B, N_SAMPLES = 2, 4096
    audio = jax.random.normal(k_audio, (B, N_SAMPLES), jnp.float32) * 0.1
    lengths = jnp.array([4096, 3584], dtype=jnp.int32)
    params = init_params(k_params)

    logits, emb, feat_lengths = forward(audio, lengths, params)
    jax.block_until_ready((logits, emb, feat_lengths))

    assert logits.shape == (B, NUM_CLASSES)
    assert emb.shape == (B, EMB)
    assert feat_lengths.shape == (B,)
    assert bool(jnp.all(jnp.isfinite(logits))) and bool(jnp.all(jnp.isfinite(emb)))
    print("KERNEL_OK")
</pallas_src>

<mosaic_0001>
module attributes {stable_mosaic.version = 11 : i64} {
  func.func @_speakernet_kernel(%arg0: i32, %arg1: memref<2xi32, #tpu.memory_space<smem>>, %arg2: memref<1x32x128xf32, #tpu.memory_space<vmem>>, %arg3: memref<256x256xbf16, #tpu.memory_space<vmem>>, %arg4: memref<128x128xbf16, #tpu.memory_space<vmem>>, %arg5: memref<3x128x128xbf16, #tpu.memory_space<vmem>>, %arg6: memref<1x128xf32, #tpu.memory_space<vmem>>, %arg7: memref<3x128x128xbf16, #tpu.memory_space<vmem>>, %arg8: memref<1x128xf32, #tpu.memory_space<vmem>>, %arg9: memref<128x256xbf16, #tpu.memory_space<vmem>>, %arg10: memref<1x256xf32, #tpu.memory_space<vmem>>, %arg11: memref<512x128xbf16, #tpu.memory_space<vmem>>, %arg12: memref<1x128xf32, #tpu.memory_space<vmem>>, %arg13: memref<128x128xbf16, #tpu.memory_space<vmem>>, %arg14: memref<1x128xf32, #tpu.memory_space<vmem>>, %arg15: memref<1x1x128xf32, #tpu.memory_space<vmem>>, %arg16: memref<1x1x128xf32, #tpu.memory_space<vmem>>) attributes {dimension_semantics = [#tpu.dimension_semantics<parallel>], iteration_bounds = array<i64: 2>, scalar_prefetch = 1 : i64, scratch_operands = 0 : i64, tpu.core_type = #tpu.core_type<tc>, window_params = [{transform_indices = @transform_0, window_bounds = array<i64: 1, 32, 128>}, {pipeline_mode = #tpu.pipeline_mode<synchronous>, transform_indices = @transform_1, window_bounds = array<i64: 256, 256>}, {pipeline_mode = #tpu.pipeline_mode<synchronous>, transform_indices = @transform_2, window_bounds = array<i64: 128, 128>}, {pipeline_mode = #tpu.pipeline_mode<synchronous>, transform_indices = @transform_3, window_bounds = array<i64: 3, 128, 128>}, {pipeline_mode = #tpu.pipeline_mode<synchronous>, transform_indices = @transform_4, window_bounds = array<i64: 1, 128>}, {pipeline_mode = #tpu.pipeline_mode<synchronous>, transform_indices = @transform_5, window_bounds = array<i64: 3, 128, 128>}, {pipeline_mode = #tpu.pipeline_mode<synchronous>, transform_indices = @transform_6, window_bounds = array<i64: 1, 128>}, {pipeline_mode = #tpu.pipeline_mode<synchronous>, transform_indices = @transform_7, window_bounds = array<i64: 128, 256>}, {pipeline_mode = #tpu.pipeline_mode<synchronous>, transform_indices = @transform_8, window_bounds = array<i64: 1, 256>}, {pipeline_mode = #tpu.pipeline_mode<synchronous>, transform_indices = @transform_9, window_bounds = array<i64: 512, 128>}, {pipeline_mode = #tpu.pipeline_mode<synchronous>, transform_indices = @transform_10, window_bounds = array<i64: 1, 128>}, {pipeline_mode = #tpu.pipeline_mode<synchronous>, transform_indices = @transform_11, window_bounds = array<i64: 128, 128>}, {pipeline_mode = #tpu.pipeline_mode<synchronous>, transform_indices = @transform_12, window_bounds = array<i64: 1, 128>}, {transform_indices = @transform_13, window_bounds = array<i64: 1, 1, 128>}, {transform_indices = @transform_14, window_bounds = array<i64: 1, 1, 128>}]} {
    %0 = arith.index_cast %arg0 : i32 to index
    %1 = memref.load %arg1[%0] : memref<2xi32, #tpu.memory_space<smem>>
    %2 = arith.sitofp %1 : i32 to f32
    %cst = arith.constant 1.000000e+00 : f32
    %3 = arith.divf %cst, %2 : f32
    %cst_0 = arith.constant 1.000000e+00 : f32
    %4 = arith.subf %2, %cst_0 : f32
    %cst_1 = arith.constant 1.000000e+00 : f32
    %5 = arith.divf %cst_1, %4 : f32
    %6 = tpu.iota {dimensions = array<i32: 0>} : vector<31x1xi32>
    %7 = vector.broadcast %1 : i32 to vector<31x1xi32>
    %8 = arith.cmpi slt, %6, %7 : vector<31x1xi32>
    %9 = arith.extui %8 : vector<31x1xi1> to vector<31x1xi32>
    %10 = arith.sitofp %9 : vector<31x1xi32> to vector<31x1xf32>
    %c0 = arith.constant 0 : index
    %c0_2 = arith.constant 0 : index
    %c0_3 = arith.constant 0 : index
    %11 = vector.load %arg2[%c0, %c0_2, %c0_3] : memref<1x32x128xf32, #tpu.memory_space<vmem>>, vector<1x32x128xf32>
    %12 = vector.shape_cast %11 : vector<1x32x128xf32> to vector<32x128xf32>
    %13 = vector.extract_strided_slice %12 {offsets = [0, 0], sizes = [31, 128], strides = [1, 1]} : vector<32x128xf32> to vector<31x128xf32>
    %14 = vector.extract_strided_slice %12 {offsets = [1, 0], sizes = [31, 128], strides = [1, 1]} : vector<32x128xf32> to vector<31x128xf32>
    %15 = tpu.concatenate %13, %14 in 1 : vector<31x128xf32>, vector<31x128xf32> -> vector<31x256xf32>
    %16 = arith.truncf %15 : vector<31x256xf32> to vector<31x256xbf16>
    %c0_4 = arith.constant 0 : index
    %c0_5 = arith.constant 0 : index
    %17 = vector.load %arg3[%c0_4, %c0_5] : memref<256x256xbf16, #tpu.memory_space<vmem>>, vector<256x256xbf16>
    %cst_6 = arith.constant dense<0.000000e+00> : vector<31x256xf32>
    %18 = tpu.matmul %16, %17, %cst_6 {dimension_numbers = #tpu.dot_dimension_numbers<[1], [0], [0], [1], [0, 0, 1, 1], [], []>} : vector<31x256xbf16>, vector<256x256xbf16>, vector<31x256xf32> -> vector<31x256xf32>
    %19 = vector.extract_strided_slice %18 {offsets = [0, 0], sizes = [31, 128], strides = [1, 1]} : vector<31x256xf32> to vector<31x128xf32>
    %20 = vector.extract_strided_slice %18 {offsets = [0, 128], sizes = [31, 128], strides = [1, 1]} : vector<31x256xf32> to vector<31x128xf32>
    %21 = arith.mulf %19, %19 : vector<31x128xf32>
    %22 = arith.mulf %20, %20 : vector<31x128xf32>
    %23 = arith.addf %21, %22 : vector<31x128xf32>
    %24 = arith.truncf %23 : vector<31x128xf32> to vector<31x128xbf16>
    %c0_7 = arith.constant 0 : index
    %c0_8 = arith.constant 0 : index
    %25 = vector.load %arg4[%c0_7, %c0_8] : memref<128x128xbf16, #tpu.memory_space<vmem>>, vector<128x128xbf16>
    %cst_9 = arith.constant dense<0.000000e+00> : vector<31x128xf32>
    %26 = tpu.matmul %24, %25, %cst_9 {dimension_numbers = #tpu.dot_dimension_numbers<[1], [0], [0], [1], [0, 0, 1, 1], [], []>} : vector<31x128xbf16>, vector<128x128xbf16>, vector<31x128xf32> -> vector<31x128xf32>
    %cst_10 = arith.constant 9.99999997E-7 : f32
    %27 = vector.broadcast %cst_10 : f32 to vector<31x128xf32>
    %28 = arith.addf %26, %27 : vector<31x128xf32>
    %29 = math.log %28 : vector<31x128xf32>
    %30 = vector.broadcast %10 : vector<31x1xf32> to vector<31x128xf32>
    %31 = arith.mulf %29, %30 : vector<31x128xf32>
    %cst_11 = arith.constant dense<0.000000e+00> : vector<128xf32>
    %32 = vector.multi_reduction <add>, %31, %cst_11 [0] : vector<31x128xf32> to vector<128xf32>
    %33 = vector.shape_cast %32 : vector<128xf32> to vector<1x128xf32>
    %34 = vector.broadcast %3 : f32 to vector<1x128xf32>
    %35 = arith.mulf %33, %34 : vector<1x128xf32>
    %36 = vector.broadcast %35 : vector<1x128xf32> to vector<31x128xf32>
    %37 = arith.subf %29, %36 : vector<31x128xf32>
    %38 = vector.broadcast %10 : vector<31x1xf32> to vector<31x128xf32>
    %39 = arith.mulf %37, %38 : vector<31x128xf32>
    %40 = arith.mulf %39, %39 : vector<31x128xf32>
    %cst_12 = arith.constant dense<0.000000e+00> : vector<128xf32>
    %41 = vector.multi_reduction <add>, %40, %cst_12 [0] : vector<31x128xf32> to vector<128xf32>
    %42 = vector.shape_cast %41 : vector<128xf32> to vector<1x128xf32>
    %43 = vector.broadcast %5 : f32 to vector<1x128xf32>
    %44 = arith.mulf %42, %43 : vector<1x128xf32>
    %45 = math.sqrt %44 : vector<1x128xf32>
    %cst_13 = arith.constant 9.99999974E-6 : f32
    %46 = vector.broadcast %cst_13 : f32 to vector<1x128xf32>
    %47 = arith.addf %45, %46 : vector<1x128xf32>
    %48 = tpu.reciprocal %47 : vector<1x128xf32> -> vector<1x128xf32>
    %49 = vector.broadcast %48 : vector<1x128xf32> to vector<31x128xf32>
    %50 = arith.mulf %39, %49 : vector<31x128xf32>
    %51 = arith.truncf %50 : vector<31x128xf32> to vector<31x128xbf16>
    %cst_14 = arith.constant 0.000000e+00 : bf16
    %52 = vector.broadcast %cst_14 : bf16 to vector<1x128xbf16>
    %53 = vector.extract_strided_slice %51 {offsets = [0, 0], sizes = [30, 128], strides = [1, 1]} : vector<31x128xbf16> to vector<30x128xbf16>
    %54 = tpu.concatenate %52, %53 in 0 : vector<1x128xbf16>, vector<30x128xbf16> -> vector<31x128xbf16>
    %55 = vector.extract_strided_slice %51 {offsets = [1, 0], sizes = [30, 128], strides = [1, 1]} : vector<31x128xbf16> to vector<30x128xbf16>
    %56 = tpu.concatenate %55, %52 in 0 : vector<30x128xbf16>, vector<1x128xbf16> -> vector<31x128xbf16>
    %c0_15 = arith.constant 0 : index
    %c0_16 = arith.constant 0 : index
    %c0_17 = arith.constant 0 : index
    %57 = vector.load %arg5[%c0_15, %c0_16, %c0_17] : memref<3x128x128xbf16, #tpu.memory_space<vmem>>, vector<1x128x128xbf16>
    %58 = vector.shape_cast %57 : vector<1x128x128xbf16> to vector<128x128xbf16>
    %cst_18 = arith.constant dense<0.000000e+00> : vector<31x128xf32>
    %59 = tpu.matmul %54, %58, %cst_18 {dimension_numbers = #tpu.dot_dimension_numbers<[1], [0], [0], [1], [0, 0, 1, 1], [], []>} : vector<31x128xbf16>, vector<128x128xbf16>, vector<31x128xf32> -> vector<31x128xf32>
    %c1 = arith.constant 1 : index
    %c0_19 = arith.constant 0 : index
    %c0_20 = arith.constant 0 : index
    %60 = vector.load %arg5[%c1, %c0_19, %c0_20] : memref<3x128x128xbf16, #tpu.memory_space<vmem>>, vector<1x128x128xbf16>
    %61 = vector.shape_cast %60 : vector<1x128x128xbf16> to vector<128x128xbf16>
    %cst_21 = arith.constant dense<0.000000e+00> : vector<31x128xf32>
    %62 = tpu.matmul %51, %61, %cst_21 {dimension_numbers = #tpu.dot_dimension_numbers<[1], [0], [0], [1], [0, 0, 1, 1], [], []>} : vector<31x128xbf16>, vector<128x128xbf16>, vector<31x128xf32> -> vector<31x128xf32>
    %63 = arith.addf %59, %62 : vector<31x128xf32>
    %c2 = arith.constant 2 : index
    %c0_22 = arith.constant 0 : index
    %c0_23 = arith.constant 0 : index
    %64 = vector.load %arg5[%c2, %c0_22, %c0_23] : memref<3x128x128xbf16, #tpu.memory_space<vmem>>, vector<1x128x128xbf16>
    %65 = vector.shape_cast %64 : vector<1x128x128xbf16> to vector<128x128xbf16>
    %cst_24 = arith.constant dense<0.000000e+00> : vector<31x128xf32>
    %66 = tpu.matmul %56, %65, %cst_24 {dimension_numbers = #tpu.dot_dimension_numbers<[1], [0], [0], [1], [0, 0, 1, 1], [], []>} : vector<31x128xbf16>, vector<128x128xbf16>, vector<31x128xf32> -> vector<31x128xf32>
    %67 = arith.addf %63, %66 : vector<31x128xf32>
    %c0_25 = arith.constant 0 : index
    %c0_26 = arith.constant 0 : index
    %68 = vector.load %arg6[%c0_25, %c0_26] : memref<1x128xf32, #tpu.memory_space<vmem>>, vector<1x128xf32>
    %69 = vector.broadcast %68 : vector<1x128xf32> to vector<31x128xf32>
    %70 = arith.addf %67, %69 : vector<31x128xf32>
    %cst_27 = arith.constant 0.000000e+00 : f32
    %71 = vector.broadcast %cst_27 : f32 to vector<31x128xf32>
    %72 = arith.maximumf %70, %71 : vector<31x128xf32>
    %73 = vector.broadcast %10 : vector<31x1xf32> to vector<31x128xf32>
    %74 = arith.mulf %72, %73 : vector<31x128xf32>
    %75 = arith.truncf %74 : vector<31x128xf32> to vector<31x128xbf16>
    %cst_28 = arith.constant 0.000000e+00 : bf16
    %76 = vector.broadcast %cst_28 : bf16 to vector<1x128xbf16>
    %77 = vector.extract_strided_slice %75 {offsets = [0, 0], sizes = [30, 128], strides = [1, 1]} : vector<31x128xbf16> to vector<30x128xbf16>
    %78 = tpu.concatenate %76, %77 in 0 : vector<1x128xbf16>, vector<30x128xbf16> -> vector<31x128xbf16>
    %79 = vector.extract_strided_slice %75 {offsets = [1, 0], sizes = [30, 128], strides = [1, 1]} : vector<31x128xbf16> to vector<30x128xbf16>
    %80 = tpu.concatenate %79, %76 in 0 : vector<30x128xbf16>, vector<1x128xbf16> -> vector<31x128xbf16>
    %c0_29 = arith.constant 0 : index
    %c0_30 = arith.constant 0 : index
    %c0_31 = arith.constant 0 : index
    %81 = vector.load %arg7[%c0_29, %c0_30, %c0_31] : memref<3x128x128xbf16, #tpu.memory_space<vmem>>, vector<1x128x128xbf16>
    %82 = vector.shape_cast %81 : vector<1x128x128xbf16> to vector<128x128xbf16>
    %cst_32 = arith.constant dense<0.000000e+00> : vector<31x128xf32>
    %83 = tpu.matmul %78, %82, %cst_32 {dimension_numbers = #tpu.dot_dimension_numbers<[1], [0], [0], [1], [0, 0, 1, 1], [], []>} : vector<31x128xbf16>, vector<128x128xbf16>, vector<31x128xf32> -> vector<31x128xf32>
    %c1_33 = arith.constant 1 : index
    %c0_34 = arith.constant 0 : index
    %c0_35 = arith.constant 0 : index
    %84 = vector.load %arg7[%c1_33, %c0_34, %c0_35] : memref<3x128x128xbf16, #tpu.memory_space<vmem>>, vector<1x128x128xbf16>
    %85 = vector.shape_cast %84 : vector<1x128x128xbf16> to vector<128x128xbf16>
    %cst_36 = arith.constant dense<0.000000e+00> : vector<31x128xf32>
    %86 = tpu.matmul %75, %85, %cst_36 {dimension_numbers = #tpu.dot_dimension_numbers<[1], [0], [0], [1], [0, 0, 1, 1], [], []>} : vector<31x128xbf16>, vector<128x128xbf16>, vector<31x128xf32> -> vector<31x128xf32>
    %87 = arith.addf %83, %86 : vector<31x128xf32>
    %c2_37 = arith.constant 2 : index
    %c0_38 = arith.constant 0 : index
    %c0_39 = arith.constant 0 : index
    %88 = vector.load %arg7[%c2_37, %c0_38, %c0_39] : memref<3x128x128xbf16, #tpu.memory_space<vmem>>, vector<1x128x128xbf16>
    %89 = vector.shape_cast %88 : vector<1x128x128xbf16> to vector<128x128xbf16>
    %cst_40 = arith.constant dense<0.000000e+00> : vector<31x128xf32>
    %90 = tpu.matmul %80, %89, %cst_40 {dimension_numbers = #tpu.dot_dimension_numbers<[1], [0], [0], [1], [0, 0, 1, 1], [], []>} : vector<31x128xbf16>, vector<128x128xbf16>, vector<31x128xf32> -> vector<31x128xf32>
    %91 = arith.addf %87, %90 : vector<31x128xf32>
    %c0_41 = arith.constant 0 : index
    %c0_42 = arith.constant 0 : index
    %92 = vector.load %arg8[%c0_41, %c0_42] : memref<1x128xf32, #tpu.memory_space<vmem>>, vector<1x128xf32>
    %93 = vector.broadcast %92 : vector<1x128xf32> to vector<31x128xf32>
    %94 = arith.addf %91, %93 : vector<31x128xf32>
    %cst_43 = arith.constant 0.000000e+00 : f32
    %95 = vector.broadcast %cst_43 : f32 to vector<31x128xf32>
    %96 = arith.maximumf %94, %95 : vector<31x128xf32>
    %97 = vector.broadcast %10 : vector<31x1xf32> to vector<31x128xf32>
    %98 = arith.mulf %96, %97 : vector<31x128xf32>
    %99 = arith.truncf %98 : vector<31x128xf32> to vector<31x128xbf16>
    %c0_44 = arith.constant 0 : index
    %c0_45 = arith.constant 0 : index
    %100 = vector.load %arg9[%c0_44, %c0_45] : memref<128x256xbf16, #tpu.memory_space<vmem>>, vector<128x256xbf16>
    %cst_46 = arith.constant dense<0.000000e+00> : vector<31x256xf32>
    %101 = tpu.matmul %99, %100, %cst_46 {dimension_numbers = #tpu.dot_dimension_numbers<[1], [0], [0], [1], [0, 0, 1, 1], [], []>} : vector<31x128xbf16>, vector<128x256xbf16>, vector<31x256xf32> -> vector<31x256xf32>
    %c0_47 = arith.constant 0 : index
    %c0_48 = arith.constant 0 : index
    %102 = vector.load %arg10[%c0_47, %c0_48] : memref<1x256xf32, #tpu.memory_space<vmem>>, vector<1x256xf32>
    %103 = vector.broadcast %102 : vector<1x256xf32> to vector<31x256xf32>
    %104 = arith.addf %101, %103 : vector<31x256xf32>
    %cst_49 = arith.constant 0.000000e+00 : f32
    %105 = vector.broadcast %cst_49 : f32 to vector<31x256xf32>
    %106 = arith.maximumf %104, %105 : vector<31x256xf32>
    %107 = vector.broadcast %10 : vector<31x1xf32> to vector<31x256xf32>
    %108 = arith.mulf %106, %107 : vector<31x256xf32>
    %cst_50 = arith.constant dense<0.000000e+00> : vector<256xf32>
    %109 = vector.multi_reduction <add>, %108, %cst_50 [0] : vector<31x256xf32> to vector<256xf32>
    %110 = vector.shape_cast %109 : vector<256xf32> to vector<1x256xf32>
    %111 = vector.broadcast %3 : f32 to vector<1x256xf32>
    %112 = arith.mulf %110, %111 : vector<1x256xf32>
    %113 = vector.broadcast %112 : vector<1x256xf32> to vector<31x256xf32>
    %114 = arith.subf %108, %113 : vector<31x256xf32>
    %115 = vector.broadcast %10 : vector<31x1xf32> to vector<31x256xf32>
    %116 = arith.mulf %114, %115 : vector<31x256xf32>
    %117 = arith.mulf %116, %116 : vector<31x256xf32>
    %cst_51 = arith.constant dense<0.000000e+00> : vector<256xf32>
    %118 = vector.multi_reduction <add>, %117, %cst_51 [0] : vector<31x256xf32> to vector<256xf32>
    %119 = vector.shape_cast %118 : vector<256xf32> to vector<1x256xf32>
    %120 = vector.broadcast %5 : f32 to vector<1x256xf32>
    %121 = arith.mulf %119, %120 : vector<1x256xf32>
    %122 = math.sqrt %121 : vector<1x256xf32>
    %123 = tpu.concatenate %112, %122 in 1 : vector<1x256xf32>, vector<1x256xf32> -> vector<1x512xf32>
    %124 = arith.truncf %123 : vector<1x512xf32> to vector<1x512xbf16>
    %c0_52 = arith.constant 0 : index
    %c0_53 = arith.constant 0 : index
    %125 = vector.load %arg11[%c0_52, %c0_53] : memref<512x128xbf16, #tpu.memory_space<vmem>>, vector<512x128xbf16>
    %cst_54 = arith.constant dense<0.000000e+00> : vector<1x128xf32>
    %126 = tpu.matmul %124, %125, %cst_54 {dimension_numbers = #tpu.dot_dimension_numbers<[1], [0], [0], [1], [0, 0, 1, 1], [], []>} : vector<1x512xbf16>, vector<512x128xbf16>, vector<1x128xf32> -> vector<1x128xf32>
    %c0_55 = arith.constant 0 : index
    %c0_56 = arith.constant 0 : index
    %127 = vector.load %arg12[%c0_55, %c0_56] : memref<1x128xf32, #tpu.memory_space<vmem>>, vector<1x128xf32>
    %128 = arith.addf %126, %127 : vector<1x128xf32>
    %129 = arith.truncf %128 : vector<1x128xf32> to vector<1x128xbf16>
    %c0_57 = arith.constant 0 : index
    %c0_58 = arith.constant 0 : index
    %130 = vector.load %arg13[%c0_57, %c0_58] : memref<128x128xbf16, #tpu.memory_space<vmem>>, vector<128x128xbf16>
    %cst_59 = arith.constant dense<0.000000e+00> : vector<1x128xf32>
    %131 = tpu.matmul %129, %130, %cst_59 {dimension_numbers = #tpu.dot_dimension_numbers<[1], [0], [0], [1], [0, 0, 1, 1], [], []>} : vector<1x128xbf16>, vector<128x128xbf16>, vector<1x128xf32> -> vector<1x128xf32>
    %c0_60 = arith.constant 0 : index
    %c0_61 = arith.constant 0 : index
    %132 = vector.load %arg14[%c0_60, %c0_61] : memref<1x128xf32, #tpu.memory_space<vmem>>, vector<1x128xf32>
    %133 = arith.addf %131, %132 : vector<1x128xf32>
    %c0_62 = arith.constant 0 : index
    %c0_63 = arith.constant 0 : index
    %c0_64 = arith.constant 0 : index
    %134 = vector.load %arg16[%c0_62, %c0_63, %c0_64] : memref<1x1x128xf32, #tpu.memory_space<vmem>>, vector<1x1x128xf32>
    %135 = vector.shape_cast %134 : vector<1x1x128xf32> to vector<1x128xf32>
    %136 = vector.shape_cast %128 : vector<1x128xf32> to vector<1x1x128xf32>
    tpu.vector_store %arg16[%c0_62, %c0_63, %c0_64], %136 {strides = array<i32>} : memref<1x1x128xf32, #tpu.memory_space<vmem>>, vector<1x1x128xf32>,
    %c0_65 = arith.constant 0 : index
    %c0_66 = arith.constant 0 : index
    %c0_67 = arith.constant 0 : index
    %137 = vector.load %arg15[%c0_65, %c0_66, %c0_67] : memref<1x1x128xf32, #tpu.memory_space<vmem>>, vector<1x1x128xf32>
    %138 = vector.shape_cast %137 : vector<1x1x128xf32> to vector<1x128xf32>
    %139 = vector.shape_cast %133 : vector<1x128xf32> to vector<1x1x128xf32>
    tpu.vector_store %arg15[%c0_65, %c0_66, %c0_67], %139 {strides = array<i32>} : memref<1x1x128xf32, #tpu.memory_space<vmem>>, vector<1x1x128xf32>,
    return
  }
  func.func @transform_0(%arg0: i32, %arg1: memref<2xi32, #tpu.memory_space<smem>>) -> (i32, i32, i32) {
    %c0_i32 = arith.constant 0 : i32
    %c0_i32_0 = arith.constant 0 : i32
    %c0_i32_1 = arith.constant 0 : i32
    return %arg0, %c0_i32, %c0_i32_0 : i32, i32, i32
  }
  func.func @transform_1(%arg0: i32, %arg1: memref<2xi32, #tpu.memory_space<smem>>) -> (i32, i32) {
    %c0_i32 = arith.constant 0 : i32
    %c0_i32_0 = arith.constant 0 : i32
    %c0_i32_1 = arith.constant 0 : i32
    return %c0_i32, %c0_i32_0 : i32, i32
  }
  func.func @transform_2(%arg0: i32, %arg1: memref<2xi32, #tpu.memory_space<smem>>) -> (i32, i32) {
    %c0_i32 = arith.constant 0 : i32
    %c0_i32_0 = arith.constant 0 : i32
    %c0_i32_1 = arith.constant 0 : i32
    return %c0_i32, %c0_i32_0 : i32, i32
  }
  func.func @transform_3(%arg0: i32, %arg1: memref<2xi32, #tpu.memory_space<smem>>) -> (i32, i32, i32) {
    %c0_i32 = arith.constant 0 : i32
    %c0_i32_0 = arith.constant 0 : i32
    %c0_i32_1 = arith.constant 0 : i32
    %c0_i32_2 = arith.constant 0 : i32
    return %c0_i32, %c0_i32_0, %c0_i32_1 : i32, i32, i32
  }
  func.func @transform_4(%arg0: i32, %arg1: memref<2xi32, #tpu.memory_space<smem>>) -> (i32, i32) {
    %c0_i32 = arith.constant 0 : i32
    %c0_i32_0 = arith.constant 0 : i32
    %c0_i32_1 = arith.constant 0 : i32
    return %c0_i32, %c0_i32_0 : i32, i32
  }
  func.func @transform_5(%arg0: i32, %arg1: memref<2xi32, #tpu.memory_space<smem>>) -> (i32, i32, i32) {
    %c0_i32 = arith.constant 0 : i32
    %c0_i32_0 = arith.constant 0 : i32
    %c0_i32_1 = arith.constant 0 : i32
    %c0_i32_2 = arith.constant 0 : i32
    return %c0_i32, %c0_i32_0, %c0_i32_1 : i32, i32, i32
  }
  func.func @transform_6(%arg0: i32, %arg1: memref<2xi32, #tpu.memory_space<smem>>) -> (i32, i32) {
    %c0_i32 = arith.constant 0 : i32
    %c0_i32_0 = arith.constant 0 : i32
    %c0_i32_1 = arith.constant 0 : i32
    return %c0_i32, %c0_i32_0 : i32, i32
  }
  func.func @transform_7(%arg0: i32, %arg1: memref<2xi32, #tpu.memory_space<smem>>) -> (i32, i32) {
    %c0_i32 = arith.constant 0 : i32
    %c0_i32_0 = arith.constant 0 : i32
    %c0_i32_1 = arith.constant 0 : i32
    return %c0_i32, %c0_i32_0 : i32, i32
  }
  func.func @transform_8(%arg0: i32, %arg1: memref<2xi32, #tpu.memory_space<smem>>) -> (i32, i32) {
    %c0_i32 = arith.constant 0 : i32
    %c0_i32_0 = arith.constant 0 : i32
    %c0_i32_1 = arith.constant 0 : i32
    return %c0_i32, %c0_i32_0 : i32, i32
  }
  func.func @transform_9(%arg0: i32, %arg1: memref<2xi32, #tpu.memory_space<smem>>) -> (i32, i32) {
    %c0_i32 = arith.constant 0 : i32
    %c0_i32_0 = arith.constant 0 : i32
    %c0_i32_1 = arith.constant 0 : i32
    return %c0_i32, %c0_i32_0 : i32, i32
  }
  func.func @transform_10(%arg0: i32, %arg1: memref<2xi32, #tpu.memory_space<smem>>) -> (i32, i32) {
    %c0_i32 = arith.constant 0 : i32
    %c0_i32_0 = arith.constant 0 : i32
    %c0_i32_1 = arith.constant 0 : i32
    return %c0_i32, %c0_i32_0 : i32, i32
  }
  func.func @transform_11(%arg0: i32, %arg1: memref<2xi32, #tpu.memory_space<smem>>) -> (i32, i32) {
    %c0_i32 = arith.constant 0 : i32
    %c0_i32_0 = arith.constant 0 : i32
    %c0_i32_1 = arith.constant 0 : i32
    return %c0_i32, %c0_i32_0 : i32, i32
  }
  func.func @transform_12(%arg0: i32, %arg1: memref<2xi32, #tpu.memory_space<smem>>) -> (i32, i32) {
    %c0_i32 = arith.constant 0 : i32
    %c0_i32_0 = arith.constant 0 : i32
    %c0_i32_1 = arith.constant 0 : i32
    return %c0_i32, %c0_i32_0 : i32, i32
  }
  func.func @transform_13(%arg0: i32, %arg1: memref<2xi32, #tpu.memory_space<smem>>) -> (i32, i32, i32) {
    %c0_i32 = arith.constant 0 : i32
    %c0_i32_0 = arith.constant 0 : i32
    %c0_i32_1 = arith.constant 0 : i32
    return %arg0, %c0_i32, %c0_i32_0 : i32, i32, i32
  }
  func.func @transform_14(%arg0: i32, %arg1: memref<2xi32, #tpu.memory_space<smem>>) -> (i32, i32, i32) {
    %c0_i32 = arith.constant 0 : i32
    %c0_i32_0 = arith.constant 0 : i32
    %c0_i32_1 = arith.constant 0 : i32
    return %arg0, %c0_i32, %c0_i32_0 : i32, i32, i32
  }
}

</mosaic_0001>

<llo_original>
// kernel: forward.1
$region0: #{forward.1}
  #allocation0 [shape = 'u32[]', space=smem, size = 0x4, offset = 0x4, fixed_abs, tag = 'smem constant byte address 0x4 - core index']
  #allocation1 [shape = 'u32[144,128]{1,0:T(1,128)}', space=vmem, size = 0x12000, scoped, tag = 'internal scratch']
  #allocation2 [shape = 's32[1]{0}', space=sflag, size = 0x4, scoped, tag = 'scoped memory for forward.1']
  #allocation3 [shape = 'u8[512]{0}', space=smem, size = 0x200, scoped, tag = 'prefetched SMEM operand 0']
  %s0 = inlined_call_operand.vmem [shape: s32[2], index: 0, kind: input, shape index: {}]
  %s1 = inlined_call_operand.vmem [shape: f32[2,32,128], index: 1, kind: input, shape index: {}]
  %s2 = inlined_call_operand.hbm [shape: bf16[256,256], index: 2, kind: input, shape index: {}]
  %s3 = inlined_call_operand.hbm [shape: bf16[128,128], index: 3, kind: input, shape index: {}]
  %s4 = inlined_call_operand.hbm [shape: bf16[3,128,128], index: 4, kind: input, shape index: {}]
  %s5 = inlined_call_operand.vmem [shape: f32[1,128], index: 5, kind: input, shape index: {}]
  %s6 = inlined_call_operand.hbm [shape: bf16[3,128,128], index: 6, kind: input, shape index: {}]
  %s7 = inlined_call_operand.vmem [shape: f32[1,128], index: 7, kind: input, shape index: {}]
  %s8 = inlined_call_operand.vmem [shape: bf16[128,256], index: 8, kind: input, shape index: {}]
  %s9 = inlined_call_operand.vmem [shape: f32[1,256], index: 9, kind: input, shape index: {}]
  %s10 = inlined_call_operand.hbm [shape: bf16[512,128], index: 10, kind: input, shape index: {}]
  %s11 = inlined_call_operand.vmem [shape: f32[1,128], index: 11, kind: input, shape index: {}]
  %s12 = inlined_call_operand.hbm [shape: bf16[128,128], index: 12, kind: input, shape index: {}]
  %s13 = inlined_call_operand.vmem [shape: f32[1,128], index: 13, kind: input, shape index: {}]
  %s14 = inlined_call_operand.hbm [shape: f32[2,1,128], index: 14, kind: output, shape index: {0}]
  %s15 = inlined_call_operand.hbm [shape: f32[2,1,128], index: 15, kind: output, shape index: {1}]
  %16 = xla_tuple %s14, %s15
  %s17 = sld [smem:[#allocation0]]
  $region117: #{forward.1} parent=0
    _
  %s19 = ssub.s32 1, %s17
  %s20 = scalar_select 0, %s19, %s17
  %s21 = sshll.u32 %s0, 4
  %s22 = int_to_ptr.vmem [resolvable:$true] %s21
  %24 = dma.vmem_to_smem %s22, 16, [#allocation3], [#allocation2]
  %25 = dma.done [#allocation2], 16
  %26 = sfence
  $region1: #{forward.1} parent=0
    #allocation4 [shape = 'u8[131072]{0}', space=vmem, size = 0x20000, scoped, tag = 'input window, operand 2, single buffered']
    #allocation5 [shape = 's32[2]{0}', space=sflag, size = 0x8, scoped, tag = 'scoped memory for forward.1']
    #allocation6 [shape = 's32[2]{0}', space=sflag, size = 0x8, scoped, tag = 'scoped memory for forward.1']
    #allocation7 [shape = 'u8[32768]{0}', space=vmem, size = 0x8000, scoped, tag = 'input window, operand 3, single buffered']
    #allocation8 [shape = 's32[1]{0}', space=sflag, size = 0x4, scoped, tag = 'scoped memory for forward.1']
    #allocation9 [shape = 'u8[98304]{0}', space=vmem, size = 0x18000, scoped, tag = 'input window, operand 4, single buffered']
    #allocation10 [shape = 'u8[98304]{0}', space=vmem, size = 0x18000, scoped, tag = 'input window, operand 6, single buffered']
    #allocation11 [shape = 's32[1]{0}', space=sflag, size = 0x4, scoped, tag = 'scoped memory for forward.1']
    #allocation12 [shape = 'u8[131072]{0}', space=vmem, size = 0x20000, scoped, tag = 'input window, operand 10, single buffered']
    #allocation13 [shape = 'u8[32768]{0}', space=vmem, size = 0x8000, scoped, tag = 'input window, operand 12, single buffered']
    #allocation14 [shape = 's32[1]{0}', space=sflag, size = 0x4, scoped, tag = 'scoped memory for forward.1']
    #allocation15 [shape = 'u8[1024]{0}', space=vmem, size = 0x400, scoped, tag = 'output window, operand 0']
    #allocation16 [shape = 'u8[1024]{0}', space=vmem, size = 0x400, scoped, tag = 'output window, operand 1']
    #allocation17 [shape = 's32[2]{0}', space=sflag, size = 0x8, scoped, tag = 'scoped memory for forward.1']
    %27 = vsyncpa [#allocation5], 0
    %28 = vsyncpa [#allocation8], 0
    %29 = vsyncpa [#allocation11], 0
    %30 = vsyncpa [#allocation14], 0
    %31 = vsyncpa [#allocation6], 0
    %s32 = scalar_lea.sflag [#allocation6], 1
    %33 = vsyncpa %s32, 0
    %34 = vsyncpa [#allocation17], 0
    %s35 = scalar_lea.sflag [#allocation17], 1
    %36 = vsyncpa %s35, 0
    loop: start=0, step=1, limit=4
    $region2: #{forward.1} parent=1 // loop_pre_header
      _
    $region3: #{forward.1} parent=1 // loop_header
      %s38 = sphi 0, %s42
      %p39 = scmp.ge.s32.totalorder %s38, 4
      %s48 = sphi 0, %s50
      %s51 = sphi 0, %s48
      %s52 = sphi 0, %s51
      %s68 = sphi 0, %s52
      %s72 = sphi 0, %s72
      %s74 = sphi 0, %s72
      %s75 = sphi 0, %s74
      %s89 = sphi 0, %s75
      %s93 = sphi 0, %s93
      %s95 = sphi 0, %s93
      %s96 = sphi 0, %s95
      %s110 = sphi 0, %s96
      %s114 = sphi 0, %s114
      %s116 = sphi 0, %s114
      %s117 = sphi 0, %s116
      %s131 = sphi 0, %s117
      %s135 = sphi 0, %s135
      %s137 = sphi 0, %s135
      %s138 = sphi 0, %s137
      %s152 = sphi 0, %s138
      %s156 = sphi 0, %s156
      %s158 = sphi 0, %s156
      %s159 = sphi 0, %s158
      %s173 = sphi 0, %s159
      %s177 = sphi 0, %s177
      %s179 = sphi 0, %s177
      %s180 = sphi 0, %s179
      %s194 = sphi 0, %s180
      %s198 = sphi 0, %s198
      %s200 = sphi 0, %s198
      %s201 = sphi 0, %s200
      %s215 = sphi 0, %s201
      %s219 = sphi 0, %s219
      %s221 = sphi 0, %s219
      %s222 = sphi 0, %s221
      %s236 = sphi 0, %s222
      %s240 = sphi 0, %s240
      %s242 = sphi 0, %s240
      %s243 = sphi 0, %s242
      %s257 = sphi 0, %s243
      %s261 = sphi 0, %s261
      %s263 = sphi 0, %s261
      %s264 = sphi 0, %s263
      %s278 = sphi 0, %s264
      %s282 = sphi 0, %s282
      %s284 = sphi 0, %s282
      %s285 = sphi 0, %s284
      %s299 = sphi 0, %s285
      %s303 = sphi 0, %s303
      %s305 = sphi 0, %s303
      %s306 = sphi 0, %s305
      %s320 = sphi 0, %s306
      %s326 = sphi 0, %s328
      %s329 = sphi 0, %s326
      %s330 = sphi 0, %s329
      %s346 = sphi 0, %s330
      %s352 = sphi 0, %s354
      %s355 = sphi 0, %s352
      %s356 = sphi 0, %s355
      %s372 = sphi 0, %s356
    $region4: #{forward.1} parent=1 // loop_header_branch
      %41 = sbr.rel (%p39) target = $region8
    $region5: #{forward.1} parent=1 // loop_body
      %s43 = ssub.s32 %s38, 1
      %s44 = ssub.s32 %s38, 2
      %s45 = sadd.s32 %s38, 1
      %s46 = ssub.s32 %s38, %s45
      %p47 = scmp.eq.s32.totalorder %s46, 0
      %s49 = sadd.s32 %s48, 1
      %s50 = scalar_select %p47, %s48, %s49
      %p53 = pneg %p47
      %p54 = scmp.eq.s32.totalorder %s38, 1
      %p55 = por %p53, %p54
      %p56 = scmp.ne.s32.totalorder %s48, %s51
      %p57 = scmp.eq.s32.totalorder %s38, 0
      %p58 = por %p56, %p57
      %p59 = scmp.ne.s32.totalorder %s48, %s51
      %p60 = scmp.eq.s32.totalorder %s43, 1
      %p61 = por %p59, %p60
      %p62 = scmp.ne.s32.totalorder %s51, %s52
      %p63 = scmp.eq.s32.totalorder %s43, 0
      %p64 = por %p62, %p63
      %p65 = scmp.ne.s32.totalorder %s51, %s52
      %p66 = scmp.eq.s32.totalorder %s44, 1
      %p67 = por %p65, %p66
      %p69 = scmp.ne.s32.totalorder %s52, %s68
      %p70 = scmp.eq.s32.totalorder %s44, 0
      %p71 = por %p69, %p70
      %s73 = sadd.s32 %s72, 1
      %p76 = scmp.eq.s32.totalorder %s38, 1
      %p77 = scmp.ne.s32.totalorder %s72, %s74
      %p78 = scmp.eq.s32.totalorder %s38, 0
      %p79 = por %p77, %p78
      %p80 = scmp.ne.s32.totalorder %s72, %s74
      %p81 = scmp.eq.s32.totalorder %s43, 1
      %p82 = por %p80, %p81
      %p83 = scmp.ne.s32.totalorder %s74, %s75
      %p84 = scmp.eq.s32.totalorder %s43, 0
      %p85 = por %p83, %p84
      %p86 = scmp.ne.s32.totalorder %s74, %s75
      %p87 = scmp.eq.s32.totalorder %s44, 1
      %p88 = por %p86, %p87
      %p90 = scmp.ne.s32.totalorder %s75, %s89
      %p91 = scmp.eq.s32.totalorder %s44, 0
      %p92 = por %p90, %p91
      %s94 = sadd.s32 %s93, 1
      %p97 = scmp.eq.s32.totalorder %s38, 1
      %p98 = scmp.ne.s32.totalorder %s93, %s95
      %p99 = scmp.eq.s32.totalorder %s38, 0
      %p100 = por %p98, %p99
      %p101 = scmp.ne.s32.totalorder %s93, %s95
      %p102 = scmp.eq.s32.totalorder %s43, 1
      %p103 = por %p101, %p102
      %p104 = scmp.ne.s32.totalorder %s95, %s96
      %p105 = scmp.eq.s32.totalorder %s43, 0
      %p106 = por %p104, %p105
      %p107 = scmp.ne.s32.totalorder %s95, %s96
      %p108 = scmp.eq.s32.totalorder %s44, 1
      %p109 = por %p107, %p108
      %p111 = scmp.ne.s32.totalorder %s96, %s110
      %p112 = scmp.eq.s32.totalorder %s44, 0
      %p113 = por %p111, %p112
      %s115 = sadd.s32 %s114, 1
      %p118 = scmp.eq.s32.totalorder %s38, 1
      %p119 = scmp.ne.s32.totalorder %s114, %s116
      %p120 = scmp.eq.s32.totalorder %s38, 0
      %p121 = por %p119, %p120
      %p122 = scmp.ne.s32.totalorder %s114, %s116
      %p123 = scmp.eq.s32.totalorder %s43, 1
      %p124 = por %p122, %p123
      %p125 = scmp.ne.s32.totalorder %s116, %s117
      %p126 = scmp.eq.s32.totalorder %s43, 0
      %p127 = por %p125, %p126
      %p128 = scmp.ne.s32.totalorder %s116, %s117
      %p129 = scmp.eq.s32.totalorder %s44, 1
      %p130 = por %p128, %p129
      %p132 = scmp.ne.s32.totalorder %s117, %s131
      %p133 = scmp.eq.s32.totalorder %s44, 0
      %p134 = por %p132, %p133
      %s136 = sadd.s32 %s135, 1
      %p139 = scmp.eq.s32.totalorder %s38, 1
      %p140 = scmp.ne.s32.totalorder %s135, %s137
      %p141 = scmp.eq.s32.totalorder %s38, 0
      %p142 = por %p140, %p141
      %p143 = scmp.ne.s32.totalorder %s135, %s137
      %p144 = scmp.eq.s32.totalorder %s43, 1
      %p145 = por %p143, %p144
      %p146 = scmp.ne.s32.totalorder %s137, %s138
      %p147 = scmp.eq.s32.totalorder %s43, 0
      %p148 = por %p146, %p147
      %p149 = scmp.ne.s32.totalorder %s137, %s138
      %p150 = scmp.eq.s32.totalorder %s44, 1
      %p151 = por %p149, %p150
      %p153 = scmp.ne.s32.totalorder %s138, %s152
      %p154 = scmp.eq.s32.totalorder %s44, 0
      %p155 = por %p153, %p154
      %s157 = sadd.s32 %s156, 1
      %p160 = scmp.eq.s32.totalorder %s38, 1
      %p161 = scmp.ne.s32.totalorder %s156, %s158
      %p162 = scmp.eq.s32.totalorder %s38, 0
      %p163 = por %p161, %p162
      %p164 = scmp.ne.s32.totalorder %s156, %s158
      %p165 = scmp.eq.s32.totalorder %s43, 1
      %p166 = por %p164, %p165
      %p167 = scmp.ne.s32.totalorder %s158, %s159
      %p168 = scmp.eq.s32.totalorder %s43, 0
      %p169 = por %p167, %p168
      %p170 = scmp.ne.s32.totalorder %s158, %s159
      %p171 = scmp.eq.s32.totalorder %s44, 1
      %p172 = por %p170, %p171
      %p174 = scmp.ne.s32.totalorder %s159, %s173
      %p175 = scmp.eq.s32.totalorder %s44, 0
      %p176 = por %p174, %p175
      %s178 = sadd.s32 %s177, 1
      %p181 = scmp.eq.s32.totalorder %s38, 1
      %p182 = scmp.ne.s32.totalorder %s177, %s179
      %p183 = scmp.eq.s32.totalorder %s38, 0
      %p184 = por %p182, %p183
      %p185 = scmp.ne.s32.totalorder %s177, %s179
      %p186 = scmp.eq.s32.totalorder %s43, 1
      %p187 = por %p185, %p186
      %p188 = scmp.ne.s32.totalorder %s179, %s180
      %p189 = scmp.eq.s32.totalorder %s43, 0
      %p190 = por %p188, %p189
      %p191 = scmp.ne.s32.totalorder %s179, %s180
      %p192 = scmp.eq.s32.totalorder %s44, 1
      %p193 = por %p191, %p192
      %p195 = scmp.ne.s32.totalorder %s180, %s194
      %p196 = scmp.eq.s32.totalorder %s44, 0
      %p197 = por %p195, %p196
      %s199 = sadd.s32 %s198, 1
      %p202 = scmp.eq.s32.totalorder %s38, 1
      %p203 = scmp.ne.s32.totalorder %s198, %s200
      %p204 = scmp.eq.s32.totalorder %s38, 0
      %p205 = por %p203, %p204
      %p206 = scmp.ne.s32.totalorder %s198, %s200
      %p207 = scmp.eq.s32.totalorder %s43, 1
      %p208 = por %p206, %p207
      %p209 = scmp.ne.s32.totalorder %s200, %s201
      %p210 = scmp.eq.s32.totalorder %s43, 0
      %p211 = por %p209, %p210
      %p212 = scmp.ne.s32.totalorder %s200, %s201
      %p213 = scmp.eq.s32.totalorder %s44, 1
      %p214 = por %p212, %p213
      %p216 = scmp.ne.s32.totalorder %s201, %s215
      %p217 = scmp.eq.s32.totalorder %s44, 0
      %p218 = por %p216, %p217
      %s220 = sadd.s32 %s219, 1
      %p223 = scmp.eq.s32.totalorder %s38, 1
      %p224 = scmp.ne.s32.totalorder %s219, %s221
      %p225 = scmp.eq.s32.totalorder %s38, 0
      %p226 = por %p224, %p225
      %p227 = scmp.ne.s32.totalorder %s219, %s221
      %p228 = scmp.eq.s32.totalorder %s43, 1
      %p229 = por %p227, %p228
      %p230 = scmp.ne.s32.totalorder %s221, %s222
      %p231 = scmp.eq.s32.totalorder %s43, 0
      %p232 = por %p230, %p231
      %p233 = scmp.ne.s32.totalorder %s221, %s222
      %p234 = scmp.eq.s32.totalorder %s44, 1
      %p235 = por %p233, %p234
      %p237 = scmp.ne.s32.totalorder %s222, %s236
      %p238 = scmp.eq.s32.totalorder %s44, 0
      %p239 = por %p237, %p238
      %s241 = sadd.s32 %s240, 1
      %p244 = scmp.eq.s32.totalorder %s38, 1
      %p245 = scmp.ne.s32.totalorder %s240, %s242
      %p246 = scmp.eq.s32.totalorder %s38, 0
      %p247 = por %p245, %p246
      %p248 = scmp.ne.s32.totalorder %s240, %s242
      %p249 = scmp.eq.s32.totalorder %s43, 1
      %p250 = por %p248, %p249
      %p251 = scmp.ne.s32.totalorder %s242, %s243
      %p252 = scmp.eq.s32.totalorder %s43, 0
      %p253 = por %p251, %p252
      %p254 = scmp.ne.s32.totalorder %s242, %s243
      %p255 = scmp.eq.s32.totalorder %s44, 1
      %p256 = por %p254, %p255
      %p258 = scmp.ne.s32.totalorder %s243, %s257
      %p259 = scmp.eq.s32.totalorder %s44, 0
      %p260 = por %p258, %p259
      %s262 = sadd.s32 %s261, 1
      %p265 = scmp.eq.s32.totalorder %s38, 1
      %p266 = scmp.ne.s32.totalorder %s261, %s263
      %p267 = scmp.eq.s32.totalorder %s38, 0
      %p268 = por %p266, %p267
      %p269 = scmp.ne.s32.totalorder %s261, %s263
      %p270 = scmp.eq.s32.totalorder %s43, 1
      %p271 = por %p269, %p270
      %p272 = scmp.ne.s32.totalorder %s263, %s264
      %p273 = scmp.eq.s32.totalorder %s43, 0
      %p274 = por %p272, %p273
      %p275 = scmp.ne.s32.totalorder %s263, %s264
      %p276 = scmp.eq.s32.totalorder %s44, 1
      %p277 = por %p275, %p276
      %p279 = scmp.ne.s32.totalorder %s264, %s278
      %p280 = scmp.eq.s32.totalorder %s44, 0
      %p281 = por %p279, %p280
      %s283 = sadd.s32 %s282, 1
      %p286 = scmp.eq.s32.totalorder %s38, 1
      %p287 = scmp.ne.s32.totalorder %s282, %s284
      %p288 = scmp.eq.s32.totalorder %s38, 0
      %p289 = por %p287, %p288
      %p290 = scmp.ne.s32.totalorder %s282, %s284
      %p291 = scmp.eq.s32.totalorder %s43, 1
      %p292 = por %p290, %p291
      %p293 = scmp.ne.s32.totalorder %s284, %s285
      %p294 = scmp.eq.s32.totalorder %s43, 0
      %p295 = por %p293, %p294
      %p296 = scmp.ne.s32.totalorder %s284, %s285
      %p297 = scmp.eq.s32.totalorder %s44, 1
      %p298 = por %p296, %p297
      %p300 = scmp.ne.s32.totalorder %s285, %s299
      %p301 = scmp.eq.s32.totalorder %s44, 0
      %p302 = por %p300, %p301
      %s304 = sadd.s32 %s303, 1
      %p307 = scmp.eq.s32.totalorder %s38, 1
      %p308 = scmp.ne.s32.totalorder %s303, %s305
      %p309 = scmp.eq.s32.totalorder %s38, 0
      %p310 = por %p308, %p309
      %p311 = scmp.ne.s32.totalorder %s303, %s305
      %p312 = scmp.eq.s32.totalorder %s43, 1
      %p313 = por %p311, %p312
      %p314 = scmp.ne.s32.totalorder %s305, %s306
      %p315 = scmp.eq.s32.totalorder %s43, 0
      %p316 = por %p314, %p315
      %p317 = scmp.ne.s32.totalorder %s305, %s306
      %p318 = scmp.eq.s32.totalorder %s44, 1
      %p319 = por %p317, %p318
      %p321 = scmp.ne.s32.totalorder %s306, %s320
      %p322 = scmp.eq.s32.totalorder %s44, 0
      %p323 = por %p321, %p322
      %s324 = ssub.s32 %s38, %s45
      %p325 = scmp.eq.s32.totalorder %s324, 0
      %s327 = sadd.s32 %s326, 1
      %s328 = scalar_select %p325, %s326, %s327
      %p331 = pneg %p325
      %p332 = scmp.eq.s32.totalorder %s38, 1
      %p333 = por %p331, %p332
      %p334 = scmp.ne.s32.totalorder %s326, %s329
      %p335 = scmp.eq.s32.totalorder %s38, 0
      %p336 = por %p334, %p335
      %p337 = scmp.ne.s32.totalorder %s326, %s329
      %p338 = scmp.eq.s32.totalorder %s43, 1
      %p339 = por %p337, %p338
      %p340 = scmp.ne.s32.totalorder %s329, %s330
      %p341 = scmp.eq.s32.totalorder %s43, 0
      %p342 = por %p340, %p341
      %p343 = scmp.ne.s32.totalorder %s329, %s330
      %p344 = scmp.eq.s32.totalorder %s44, 1
      %p345 = por %p343, %p344
      %p347 = scmp.ne.s32.totalorder %s330, %s346
      %p348 = scmp.eq.s32.totalorder %s44, 0
      %p349 = por %p347, %p348
      %s350 = ssub.s32 %s38, %s45
      %p351 = scmp.eq.s32.totalorder %s350, 0
      %s353 = sadd.s32 %s352, 1
      %s354 = scalar_select %p351, %s352, %s353
      %p357 = pneg %p351
      %p358 = scmp.eq.s32.totalorder %s38, 1
      %p359 = por %p357, %p358
      %p360 = scmp.ne.s32.totalorder %s352, %s355
      %p361 = scmp.eq.s32.totalorder %s38, 0
      %p362 = por %p360, %p361
      %p363 = scmp.ne.s32.totalorder %s352, %s355
      %p364 = scmp.eq.s32.totalorder %s43, 1
      %p365 = por %p363, %p364
      %p366 = scmp.ne.s32.totalorder %s355, %s356
      %p367 = scmp.eq.s32.totalorder %s43, 0
      %p368 = por %p366, %p367
      %p369 = scmp.ne.s32.totalorder %s355, %s356
      %p370 = scmp.eq.s32.totalorder %s44, 1
      %p371 = por %p369, %p370
      %p373 = scmp.ne.s32.totalorder %s356, %s372
      %p374 = scmp.eq.s32.totalorder %s44, 0
      %p375 = por %p373, %p374
      %p376 = scmp.le.s32.totalorder 1, %s38
      %p377 = scmp.lt.s32.totalorder %s38, 3
      %p378 = pnand %p376, %p377
      %p379 = pneg %p378
      // Predicated region
      $region9: #{forward.1} parent=5 // pred_check
        _
      $region10: #{forward.1} parent=5 // pred_check_branch
        %381 = sbr.rel (%p378) target = $region12
      $region11: #{forward.1} parent=5 // pred_region
        %s382 = ssub.s32 %s38, 1
        // Predicated region
        $region13: #{forward.1} parent=11 // pred_check
          %p383 = pneg %p85
        $region14: #{forward.1} parent=11 // pred_check_branch
          %385 = sbr.rel (%p383) target = $region16
        $region15: #{forward.1} parent=11 // pred_region
          %s387 = ssub.s32 4096, 4096
          %388 = vsyncadd [#allocation5], %s387
          %s389 = sshll.u32 [#allocation4], 4
          %s390 = int_to_ptr.vmem [resolvable:$true] %s389
          %395 = dma.hbm_to_vmem [thread:$0]  %s2, 4096, %s390, [#allocation5], 128, 128, 8
        $region16: #{forward.1} parent=11 // pred_fallthru
          _
        // Predicated region
        $region17: #{forward.1} parent=11 // pred_check
          %p396 = pneg %p106
        $region18: #{forward.1} parent=11 // pred_check_branch
          %398 = sbr.rel (%p396) target = $region20
        $region19: #{forward.1} parent=11 // pred_region
          %s400 = ssub.s32 1024, 1024
          %401 = vsyncadd [#allocation8], %s400
          %s402 = sshll.u32 [#allocation7], 4
          %s403 = int_to_ptr.vmem [resolvable:$true] %s402
          %408 = dma.hbm_to_vmem [thread:$0]  %s3, 1024, %s403, [#allocation8], 64, 64, 4
        $region20: #{forward.1} parent=11 // pred_fallthru
          _
        // Predicated region
        $region21: #{forward.1} parent=11 // pred_check
          %p409 = pneg %p127
        $region22: #{forward.1} parent=11 // pred_check_branch
          %411 = sbr.rel (%p409) target = $region24
        $region23: #{forward.1} parent=11 // pred_region
          %s413 = ssub.s32 3072, 3072
          %414 = vsyncadd [#allocation8], %s413
          %s415 = sshll.u32 [#allocation9], 4
          %s416 = int_to_ptr.vmem [resolvable:$true] %s415
          %421 = dma.hbm_to_vmem [thread:$0]  %s4, 3072, %s416, [#allocation8], 64, 64, 4
        $region24: #{forward.1} parent=11 // pred_fallthru
          _
        // Predicated region
        $region25: #{forward.1} parent=11 // pred_check
          %p422 = pneg %p148
        $region26: #{forward.1} parent=11 // pred_check_branch
          %424 = sbr.rel (%p422) target = $region28
        $region27: #{forward.1} parent=11 // pred_region
          _
        $region28: #{forward.1} parent=11 // pred_fallthru
          _
        // Predicated region
        $region29: #{forward.1} parent=11 // pred_check
          %p425 = pneg %p169
        $region30: #{forward.1} parent=11 // pred_check_branch
          %427 = sbr.rel (%p425) target = $region32
        $region31: #{forward.1} parent=11 // pred_region
          %s429 = ssub.s32 3072, 3072
          %430 = vsyncadd [#allocation11], %s429
          %s431 = sshll.u32 [#allocation10], 4
          %s432 = int_to_ptr.vmem [resolvable:$true] %s431
          %437 = dma.hbm_to_vmem [thread:$0]  %s6, 3072, %s432, [#allocation11], 64, 64, 4
        $region32: #{forward.1} parent=11 // pred_fallthru
          _
        // Predicated region
        $region33: #{forward.1} parent=11 // pred_check
          %p438 = pneg %p190
        $region34: #{forward.1} parent=11 // pred_check_branch
          %440 = sbr.rel (%p438) target = $region36
        $region35: #{forward.1} parent=11 // pred_region
          _
        $region36: #{forward.1} parent=11 // pred_fallthru
          _
        // Predicated region
        $region37: #{forward.1} parent=11 // pred_check
          %p441 = pneg %p211
        $region38: #{forward.1} parent=11 // pred_check_branch
          %443 = sbr.rel (%p441) target = $region40
        $region39: #{forward.1} parent=11 // pred_region
          _
        $region40: #{forward.1} parent=11 // pred_fallthru
          _
        // Predicated region
        $region41: #{forward.1} parent=11 // pred_check
          %p444 = pneg %p232
        $region42: #{forward.1} parent=11 // pred_check_branch
          %446 = sbr.rel (%p444) target = $region44
        $region43: #{forward.1} parent=11 // pred_region
          _
        $region44: #{forward.1} parent=11 // pred_fallthru
          _
        // Predicated region
        $region45: #{forward.1} parent=11 // pred_check
          %p447 = pneg %p253
        $region46: #{forward.1} parent=11 // pred_check_branch
          %449 = sbr.rel (%p447) target = $region48
        $region47: #{forward.1} parent=11 // pred_region
          %s451 = ssub.s32 4096, 4096
          %452 = vsyncadd [#allocation11], %s451
          %s453 = sshll.u32 [#allocation12], 4
          %s454 = int_to_ptr.vmem [resolvable:$true] %s453
          %459 = dma.hbm_to_vmem [thread:$0]  %s10, 4096, %s454, [#allocation11], 64, 64, 4
        $region48: #{forward.1} parent=11 // pred_fallthru
          _
        // Predicated region
        $region49: #{forward.1} parent=11 // pred_check
          %p460 = pneg %p274
        $region50: #{forward.1} parent=11 // pred_check_branch
          %462 = sbr.rel (%p460) target = $region52
        $region51: #{forward.1} parent=11 // pred_region
          _
        $region52: #{forward.1} parent=11 // pred_fallthru
          _
        // Predicated region
        $region53: #{forward.1} parent=11 // pred_check
          %p463 = pneg %p295
        $region54: #{forward.1} parent=11 // pred_check_branch
          %465 = sbr.rel (%p463) target = $region56
        $region55: #{forward.1} parent=11 // pred_region
          %s467 = ssub.s32 1024, 1024
          %468 = vsyncadd [#allocation14], %s467
          %s469 = sshll.u32 [#allocation13], 4
          %s470 = int_to_ptr.vmem [resolvable:$true] %s469
          %475 = dma.hbm_to_vmem [thread:$0]  %s12, 1024, %s470, [#allocation14], 64, 64, 4
        $region56: #{forward.1} parent=11 // pred_fallthru
          _
        // Predicated region
        $region57: #{forward.1} parent=11 // pred_check
          %p476 = pneg %p316
        $region58: #{forward.1} parent=11 // pred_check_branch
          %478 = sbr.rel (%p476) target = $region60
        $region59: #{forward.1} parent=11 // pred_region
          _
        $region60: #{forward.1} parent=11 // pred_fallthru
          _
      $region12: #{forward.1} parent=5 // pred_fallthru
        _
      %p479 = scmp.lt.s32.totalorder %s38, 2
      // Predicated region
      $region61: #{forward.1} parent=5 // pred_check
        %p480 = pneg %p479
      $region62: #{forward.1} parent=5 // pred_check_branch
        %482 = sbr.rel (%p480) target = $region64
      $region63: #{forward.1} parent=5 // pred_region
        // Predicated region
        $region65: #{forward.1} parent=63 // pred_check
          %p483 = pneg %p58
        $region66: #{forward.1} parent=63 // pred_check_branch
          %485 = sbr.rel (%p483) target = $region68
        $region67: #{forward.1} parent=63 // pred_region
          %p486 = scmp.lt.s32.totalorder %s38, 1
          %s487 = scalar_select %p486, %s38, 1
          %s488 = smul.addr %s487, 4
          %s489 = smul.addr %s488, 8
          %s490 = scalar_lea.vmem %s1, %s489
        $region68: #{forward.1} parent=63 // pred_fallthru
          _
      $region64: #{forward.1} parent=5 // pred_fallthru
        _
      %p491 = scmp.le.s32.totalorder 1, %s38
      %p492 = scmp.lt.s32.totalorder %s38, 3
      %p493 = pnand %p491, %p492
      %p494 = pneg %p493
      // Predicated region
      $region69: #{forward.1} parent=5 // pred_check
        _
      $region70: #{forward.1} parent=5 // pred_check_branch
        %496 = sbr.rel (%p493) target = $region72
      $region71: #{forward.1} parent=5 // pred_region
        %s497 = ssub.s32 %s38, 1
        // Predicated region
        $region73: #{forward.1} parent=71 // pred_check
          %p498 = pneg %p85
        $region74: #{forward.1} parent=71 // pred_check_branch
          %500 = sbr.rel (%p498) target = $region76
        $region75: #{forward.1} parent=71 // pred_region
          %501 = dma.done [#allocation5], 4096
        $region76: #{forward.1} parent=71 // pred_fallthru
          _
        // Predicated region
        $region77: #{forward.1} parent=71 // pred_check
          %p502 = pneg %p106
        $region78: #{forward.1} parent=71 // pred_check_branch
          %504 = sbr.rel (%p502) target = $region80
        $region79: #{forward.1} parent=71 // pred_region
          %505 = dma.done [#allocation8], 1024
        $region80: #{forward.1} parent=71 // pred_fallthru
          _
        // Predicated region
        $region81: #{forward.1} parent=71 // pred_check
          %p506 = pneg %p127
        $region82: #{forward.1} parent=71 // pred_check_branch
          %508 = sbr.rel (%p506) target = $region84
        $region83: #{forward.1} parent=71 // pred_region
          %509 = dma.done [#allocation8], 3072
        $region84: #{forward.1} parent=71 // pred_fallthru
          _
        // Predicated region
        $region85: #{forward.1} parent=71 // pred_check
          %p510 = pneg %p169
        $region86: #{forward.1} parent=71 // pred_check_branch
          %512 = sbr.rel (%p510) target = $region88
        $region87: #{forward.1} parent=71 // pred_region
          %513 = dma.done [#allocation11], 3072
        $region88: #{forward.1} parent=71 // pred_fallthru
          _
        // Predicated region
        $region89: #{forward.1} parent=71 // pred_check
          %p514 = pneg %p253
        $region90: #{forward.1} parent=71 // pred_check_branch
          %516 = sbr.rel (%p514) target = $region92
        $region91: #{forward.1} parent=71 // pred_region
          %517 = dma.done [#allocation11], 4096
        $region92: #{forward.1} parent=71 // pred_fallthru
          _
        // Predicated region
        $region93: #{forward.1} parent=71 // pred_check
          %p518 = pneg %p295
        $region94: #{forward.1} parent=71 // pred_check_branch
          %520 = sbr.rel (%p518) target = $region96
        $region95: #{forward.1} parent=71 // pred_region
          %521 = dma.done [#allocation14], 1024
        $region96: #{forward.1} parent=71 // pred_fallthru
          _
        %p522 = scmp.lt.s32.totalorder %s43, 1
        %s523 = scalar_select %p522, %s43, 1
        %s524 = smul.addr %s523, 4
        %s525 = smul.addr %s524, 8
        %s526 = scalar_lea.vmem %s1, %s525
        %p527 = pneg %p64
        %p528 = pneg %p61
        %p529 = pneg %p85
        %p530 = pneg %p82
        %p531 = pneg %p106
        %p532 = pneg %p103
        %p533 = pneg %p127
        %p534 = pneg %p124
        %p535 = pneg %p148
        %p536 = pneg %p145
        %p537 = pneg %p169
        %p538 = pneg %p166
        %p539 = pneg %p190
        %p540 = pneg %p187
        %p541 = pneg %p211
        %p542 = pneg %p208
        %p543 = pneg %p232
        %p544 = pneg %p229
        %p545 = pneg %p253
        %p546 = pneg %p250
        %p547 = pneg %p274
        %p548 = pneg %p271
        %p549 = pneg %p295
        %p550 = pneg %p292
        %p551 = pneg %p316
        %p552 = pneg %p313
        %p553 = pneg %p342
        %p554 = pneg %p339
        %s555 = sand.u32 %s329, 1
        %s556 = scalar_lea.sflag [#allocation6], %s555
        %s557 = sand.u32 %s329, 1
        %s558 = scalar_lea.vmem [#allocation15], %s557
        %p559 = pneg %p368
        %p560 = pneg %p365
        %s561 = sand.u32 %s355, 1
        %s562 = scalar_lea.sflag [#allocation17], %s561
        %s563 = sand.u32 %s355, 1
        %s564 = scalar_lea.vmem [#allocation16], %s563
        %p565 = scmp.lt.s32.totalorder %s43, 1
        %s566 = scalar_select %p565, %s43, 1
        %s567 = smul.addr %s566, 4
        %s568 = smul.addr %s567, 8
        %s569 = scalar_lea.vmem %s1, %s568
        %s571 = sld [smem:[#allocation3 + %s43]]
        %s572 = scvt.s32.f32 %s571
        %v573 = vstv %s572
        %v574 = vrcp.pop %v573
        %s575 = vtos %v574
        %s576 = ssub.f32 %s572, 1.0
        %v577 = vstv %s576
        %v578 = vrcp.pop %v577
        %s579 = vtos %v578
        %v580 = vlaneseq
        %v581 = vshrl.u32 %v580, 7
        %v582 = vadd.s32 %v581, 8
        %v583 = vadd.s32 %v581, 16
        %v584 = vadd.s32 %v581, 24
        %v585 = vstv %s571
        %vm586 = vcmp.lt.s32.totalorder %v581, %v585
        %vm587 = vcmp.lt.s32.totalorder %v582, %v585
        %vm588 = vcmp.lt.s32.totalorder %v583, %v585
        %vm589 = vcmp.lt.s32.totalorder %v584, %v585
        %v590 = vsel %vm586, 1, 0
        %v591 = vsel %vm587, 1, 0
        %v592 = vsel %vm588, 1, 0
        %v593 = vsel %vm589, 1, 0
        %v594 = vcvt.s32.f32 %v590
        %v595 = vcvt.s32.f32 %v591
        %v596 = vcvt.s32.f32 %v592
        %v597 = vcvt.s32.f32 %v593
        %v598 = vld [vmem:[%s569] sm:$0xff]
        %v599 = vld [vmem:[%s569 + $0x8] sm:$0xff]
        %v600 = vld [vmem:[%s569 + $0x10] sm:$0xff]
        %v601 = vld [vmem:[%s569 + $0x18] sm:$0xff]
        %vm606 = vcmask 1046528
        %v607 = vrot.slane %v598, 1
        %v608 = vrot.slane %v599, 1
        %v609 = vsel %vm606, %v607, %v608
        %v610 = vrot.slane %v600, 1
        %v611 = vsel %vm606, %v608, %v610
        %v612 = vrot.slane %v601, 1
        %v613 = vsel %vm606, %v610, %v612
        %v618 = vpack.c.bf16 %v599, %v598
        %v619 = vpack.c.bf16 %v611, %v609
        %v620 = vpack.c.bf16 %v601, %v600
        %v621 = vpack.c.bf16 %v612, %v613
        %v622 = vld [vmem:[#allocation4] sm:$0xff]
        %v623 = vld [vmem:[#allocation4 + $0x8] sm:$0xff]
        %v624 = vld [vmem:[#allocation4 + $0x10] sm:$0xff]
        %v625 = vld [vmem:[#allocation4 + $0x18] sm:$0xff]
        %v626 = vld [vmem:[#allocation4 + $0x20] sm:$0xff]
        %v627 = vld [vmem:[#allocation4 + $0x28] sm:$0xff]
        %v628 = vld [vmem:[#allocation4 + $0x30] sm:$0xff]
        %v629 = vld [vmem:[#allocation4 + $0x38] sm:$0xff]
        %v630 = vld [vmem:[#allocation4 + $0x40] sm:$0xff]
        %v631 = vld [vmem:[#allocation4 + $0x48] sm:$0xff]
        %v632 = vld [vmem:[#allocation4 + $0x50] sm:$0xff]
        %v633 = vld [vmem:[#allocation4 + $0x58] sm:$0xff]
        %v634 = vld [vmem:[#allocation4 + $0x60] sm:$0xff]
        %v635 = vld [vmem:[#allocation4 + $0x68] sm:$0xff]
        %v636 = vld [vmem:[#allocation4 + $0x70] sm:$0xff]
        %v637 = vld [vmem:[#allocation4 + $0x78] sm:$0xff]
        %v638 = vld [vmem:[#allocation4 + $0x80] sm:$0xff]
        %v639 = vld [vmem:[#allocation4 + $0x88] sm:$0xff]
        %v640 = vld [vmem:[#allocation4 + $0x90] sm:$0xff]
        %v641 = vld [vmem:[#allocation4 + $0x98] sm:$0xff]
        %v642 = vld [vmem:[#allocation4 + $0xa0] sm:$0xff]
        %v643 = vld [vmem:[#allocation4 + $0xa8] sm:$0xff]
        %v644 = vld [vmem:[#allocation4 + $0xb0] sm:$0xff]
        %v645 = vld [vmem:[#allocation4 + $0xb8] sm:$0xff]
        %v646 = vld [vmem:[#allocation4 + $0xc0] sm:$0xff]
        %v647 = vld [vmem:[#allocation4 + $0xc8] sm:$0xff]
        %v648 = vld [vmem:[#allocation4 + $0xd0] sm:$0xff]
        %v649 = vld [vmem:[#allocation4 + $0xd8] sm:$0xff]
        %v650 = vld [vmem:[#allocation4 + $0xe0] sm:$0xff]
        %v651 = vld [vmem:[#allocation4 + $0xe8] sm:$0xff]
        %v652 = vld [vmem:[#allocation4 + $0xf0] sm:$0xff]
        %v653 = vld [vmem:[#allocation4 + $0xf8] sm:$0xff]
        %v686 = vunpack.c.l.b16 %v622
        %v687 = vunpack.c.h.b16 %v622
        %v688 = vunpack.c.l.b16 %v623
        %v689 = vunpack.c.h.b16 %v623
        %v690 = vunpack.c.l.b16 %v624
        %v691 = vunpack.c.h.b16 %v624
        %v692 = vunpack.c.l.b16 %v625
        %v693 = vunpack.c.h.b16 %v625
        %v694 = vunpack.c.l.b16 %v626
        %v695 = vunpack.c.h.b16 %v626
        %v696 = vunpack.c.l.b16 %v627
        %v697 = vunpack.c.h.b16 %v627
        %v698 = vunpack.c.l.b16 %v628
        %v699 = vunpack.c.h.b16 %v628
        %v700 = vunpack.c.l.b16 %v629
        %v701 = vunpack.c.h.b16 %v629
        %v702 = vunpack.c.l.b16 %v630
        %v703 = vunpack.c.h.b16 %v630
        %v704 = vunpack.c.l.b16 %v631
        %v705 = vunpack.c.h.b16 %v631
        %v706 = vunpack.c.l.b16 %v632
        %v707 = vunpack.c.h.b16 %v632
        %v708 = vunpack.c.l.b16 %v633
        %v709 = vunpack.c.h.b16 %v633
        %v710 = vunpack.c.l.b16 %v634
        %v711 = vunpack.c.h.b16 %v634
        %v712 = vunpack.c.l.b16 %v635
        %v713 = vunpack.c.h.b16 %v635
        %v714 = vunpack.c.l.b16 %v636
        %v715 = vunpack.c.h.b16 %v636
        %v716 = vunpack.c.l.b16 %v637
        %v717 = vunpack.c.h.b16 %v637
        %v718 = vunpack.c.l.b16 %v638
        %v719 = vunpack.c.h.b16 %v638
        %v720 = vunpack.c.l.b16 %v639
        %v721 = vunpack.c.h.b16 %v639
        %v722 = vunpack.c.l.b16 %v640
        %v723 = vunpack.c.h.b16 %v640
        %v724 = vunpack.c.l.b16 %v641
        %v725 = vunpack.c.h.b16 %v641
        %v726 = vunpack.c.l.b16 %v642
        %v727 = vunpack.c.h.b16 %v642
        %v728 = vunpack.c.l.b16 %v643
        %v729 = vunpack.c.h.b16 %v643
        %v730 = vunpack.c.l.b16 %v644
        %v731 = vunpack.c.h.b16 %v644
        %v732 = vunpack.c.l.b16 %v645
        %v733 = vunpack.c.h.b16 %v645
        %v734 = vunpack.c.l.b16 %v646
        %v735 = vunpack.c.h.b16 %v646
        %v736 = vunpack.c.l.b16 %v647
        %v737 = vunpack.c.h.b16 %v647
        %v738 = vunpack.c.l.b16 %v648
        %v739 = vunpack.c.h.b16 %v648
        %v740 = vunpack.c.l.b16 %v649
        %v741 = vunpack.c.h.b16 %v649
        %v742 = vunpack.c.l.b16 %v650
        %v743 = vunpack.c.h.b16 %v650
        %v744 = vunpack.c.l.b16 %v651
        %v745 = vunpack.c.h.b16 %v651
        %v746 = vunpack.c.l.b16 %v652
        %v747 = vunpack.c.h.b16 %v652
        %v748 = vunpack.c.l.b16 %v653
        %v749 = vunpack.c.h.b16 %v653
        %v750 = vpack.c.b16 %v688, %v686
        %v751 = vpack.c.b16 %v689, %v687
        %v752 = vpack.c.b16 %v692, %v690
        %v753 = vpack.c.b16 %v693, %v691
        %v754 = vpack.c.b16 %v696, %v694
        %v755 = vpack.c.b16 %v697, %v695
        %v756 = vpack.c.b16 %v700, %v698
        %v757 = vpack.c.b16 %v701, %v699
        %v758 = vpack.c.b16 %v704, %v702
        %v759 = vpack.c.b16 %v705, %v703
        %v760 = vpack.c.b16 %v708, %v706
        %v761 = vpack.c.b16 %v709, %v707
        %v762 = vpack.c.b16 %v712, %v710
        %v763 = vpack.c.b16 %v713, %v711
        %v764 = vpack.c.b16 %v716, %v714
        %v765 = vpack.c.b16 %v717, %v715
        %v766 = vpack.c.b16 %v720, %v718
        %v767 = vpack.c.b16 %v721, %v719
        %v768 = vpack.c.b16 %v724, %v722
        %v769 = vpack.c.b16 %v725, %v723
        %v770 = vpack.c.b16 %v728, %v726
        %v771 = vpack.c.b16 %v729, %v727
        %v772 = vpack.c.b16 %v732, %v730
        %v773 = vpack.c.b16 %v733, %v731
        %v774 = vpack.c.b16 %v736, %v734
        %v775 = vpack.c.b16 %v737, %v735
        %v776 = vpack.c.b16 %v740, %v738
        %v777 = vpack.c.b16 %v741, %v739
        %v778 = vpack.c.b16 %v744, %v742
        %v779 = vpack.c.b16 %v745, %v743
        %v780 = vpack.c.b16 %v748, %v746
        %v781 = vpack.c.b16 %v749, %v747
        %814 = vmatprep.subr.bf16.mxu0 %v751
        %815 = vmatpush1.bf16.msra.mxu0 %v750
        %816 = vmatprep.subr.bf16.mxu0 %v753
        %817 = vmatpush1.bf16.msra.mxu0 %v752
        %818 = vmatprep.subr.bf16.mxu0 %v755
        %819 = vmatpush1.bf16.msra.mxu0 %v754
        %820 = vmatprep.subr.bf16.mxu0 %v757
        %821 = vmatpush1.bf16.msra.mxu0 %v756
        %822 = vmatprep.subr.bf16.mxu0 %v759
        %823 = vmatpush1.bf16.msra.mxu0 %v758
        %824 = vmatprep.subr.bf16.mxu0 %v761
        %825 = vmatpush1.bf16.msra.mxu0 %v760
        %826 = vmatprep.subr.bf16.mxu0 %v763
        %827 = vmatpush1.bf16.msra.mxu0 %v762
        %828 = vmatprep.subr.bf16.mxu0 %v765
        %829 = vmatpush1.bf16.msra.mxu0 %v764
        %830 = vmatprep.subr.bf16.mxu0 %v767
        %831 = vmatpush1.bf16.msra.mxu0 %v766
        %832 = vmatprep.subr.bf16.mxu0 %v769
        %833 = vmatpush1.bf16.msra.mxu0 %v768
        %834 = vmatprep.subr.bf16.mxu0 %v771
        %835 = vmatpush1.bf16.msra.mxu0 %v770
        %836 = vmatprep.subr.bf16.mxu0 %v773
        %837 = vmatpush1.bf16.msra.mxu0 %v772
        %838 = vmatprep.subr.bf16.mxu0 %v775
        %839 = vmatpush1.bf16.msra.mxu0 %v774
        %840 = vmatprep.subr.bf16.mxu0 %v777
        %841 = vmatpush1.bf16.msra.mxu0 %v776
        %842 = vmatprep.subr.bf16.mxu0 %v779
        %843 = vmatpush1.bf16.msra.mxu0 %v778
        %844 = vmatprep.subr.bf16.mxu0 %v781
        %845 = vmatpush1.bf16.msra.mxu0 %v780
        %846 = vmatprep.mubr.bf16.mxu0 %v619
        %847 = vmatmul.mubr.bf16.gmra.mrb[0].mxu0 %v618
        %v848 = vpop.f32.mrb[0].mxu0
        %v849 = vadd.f32 0.0, %v848
        %v850 = vpop.f32.mrb[0].mxu0
        %v851 = vadd.f32 0.0, %v850
        %v852 = vpop.f32.mrb[0].mxu0
        %v853 = vadd.f32 0.0, %v852
        %v854 = vpop.f32.mrb[0].mxu0
        %v855 = vadd.f32 0.0, %v854
        %856 = vmatprep.mubr.bf16.mxu0 %v621
        %857 = vmatmul.mubr.bf16.gmra.mrb[0].mxu0 %v620
        %v858 = vpop.f32.mrb[0].mxu0
        %v859 = vadd.f32 0.0, %v858
        %v860 = vpop.f32.mrb[0].mxu0
        %v861 = vadd.f32 0.0, %v860
        %v862 = vpop.f32.mrb[0].mxu0
        %v863 = vadd.f32 0.0, %v862
        %v864 = vpop.f32.mrb[0].mxu0
        %v865 = vadd.f32 0.0, %v864
        %866 = vdwg.mxu0
        %v867 = vmul.f32 %v849, %v849
        %v868 = vmul.f32 %v853, %v853
        %v869 = vmul.f32 %v859, %v859
        %v870 = vmul.f32 %v863, %v863
        %v871 = vmul.f32 %v851, %v851
        %v872 = vmul.f32 %v855, %v855
        %v873 = vmul.f32 %v861, %v861
        %v874 = vmul.f32 %v865, %v865
        %v875 = vadd.f32 %v867, %v871
        %v876 = vadd.f32 %v868, %v872
        %v877 = vadd.f32 %v869, %v873
        %v878 = vadd.f32 %v870, %v874
        %v879 = vpack.c.bf16 %v876, %v875
        %v880 = vpack.c.bf16 %v878, %v877
        %v881 = vld [vmem:[#allocation7] sm:$0xf]
        %v882 = vld [vmem:[#allocation7 + $0x4] sm:$0xf]
        %v883 = vld [vmem:[#allocation7 + $0x8] sm:$0xf]
        %v884 = vld [vmem:[#allocation7 + $0xc] sm:$0xf]
        %v885 = vld [vmem:[#allocation7 + $0x10] sm:$0xf]
        %v886 = vld [vmem:[#allocation7 + $0x14] sm:$0xf]
        %v887 = vld [vmem:[#allocation7 + $0x18] sm:$0xf]
        %v888 = vld [vmem:[#allocation7 + $0x1c] sm:$0xf]
        %v889 = vld [vmem:[#allocation7 + $0x20] sm:$0xf]
        %v890 = vld [vmem:[#allocation7 + $0x24] sm:$0xf]
        %v891 = vld [vmem:[#allocation7 + $0x28] sm:$0xf]
        %v892 = vld [vmem:[#allocation7 + $0x2c] sm:$0xf]
        %v893 = vld [vmem:[#allocation7 + $0x30] sm:$0xf]
        %v894 = vld [vmem:[#allocation7 + $0x34] sm:$0xf]
        %v895 = vld [vmem:[#allocation7 + $0x38] sm:$0xf]
        %v896 = vld [vmem:[#allocation7 + $0x3c] sm:$0xf]
        %v913 = vunpack.c.l.b16 %v881
        %v914 = vunpack.c.l.b16 %v882
        %v915 = vunpack.c.l.b16 %v883
        %v916 = vunpack.c.l.b16 %v884
        %v917 = vunpack.c.l.b16 %v885
        %v918 = vunpack.c.l.b16 %v886
        %v919 = vunpack.c.l.b16 %v887
        %v920 = vunpack.c.l.b16 %v888
        %v921 = vunpack.c.l.b16 %v889
        %v922 = vunpack.c.l.b16 %v890
        %v923 = vunpack.c.l.b16 %v891
        %v924 = vunpack.c.l.b16 %v892
        %v925 = vunpack.c.l.b16 %v893
        %v926 = vunpack.c.l.b16 %v894
        %v927 = vunpack.c.l.b16 %v895
        %v928 = vunpack.c.l.b16 %v896
        %v929 = vpack.c.b16 %v914, %v913
        %v930 = vpack.c.b16 %v916, %v915
        %v931 = vpack.c.b16 %v918, %v917
        %v932 = vpack.c.b16 %v920, %v919
        %v933 = vpack.c.b16 %v922, %v921
        %v934 = vpack.c.b16 %v924, %v923
        %v935 = vpack.c.b16 %v926, %v925
        %v936 = vpack.c.b16 %v928, %v927
        %945 = vmatprep.subr.bf16.mxu0 0
        %946 = vmatpush1.bf16.msra.mxu0 %v929
        %947 = vmatprep.subr.bf16.mxu0 0
        %948 = vmatpush1.bf16.msra.mxu0 %v930
        %949 = vmatprep.subr.bf16.mxu0 0
        %950 = vmatpush1.bf16.msra.mxu0 %v931
        %951 = vmatprep.subr.bf16.mxu0 0
        %952 = vmatpush1.bf16.msra.mxu0 %v932
        %953 = vmatprep.subr.bf16.mxu0 0
        %954 = vmatpush1.bf16.msra.mxu0 %v933
        %955 = vmatprep.subr.bf16.mxu0 0
        %956 = vmatpush1.bf16.msra.mxu0 %v934
        %957 = vmatprep.subr.bf16.mxu0 0
        %958 = vmatpush1.bf16.msra.mxu0 %v935
        %959 = vmatprep.subr.bf16.mxu0 0
        %960 = vmatpush1.bf16.msra.mxu0 %v936
        %961 = vmatprep.subr.bf16.mxu0 0
        %962 = vmatpush1.bf16.msra.mxu0 0
        %963 = vmatprep.subr.bf16.mxu0 0
        %964 = vmatpush1.bf16.msra.mxu0 0
        %965 = vmatprep.subr.bf16.mxu0 0
        %966 = vmatpush1.bf16.msra.mxu0 0
        %967 = vmatprep.subr.bf16.mxu0 0
        %968 = vmatpush1.bf16.msra.mxu0 0
        %969 = vmatprep.subr.bf16.mxu0 0
        %970 = vmatpush1.bf16.msra.mxu0 0
        %971 = vmatprep.subr.bf16.mxu0 0
        %972 = vmatpush1.bf16.msra.mxu0 0
        %973 = vmatprep.subr.bf16.mxu0 0
        %974 = vmatpush1.bf16.msra.mxu0 0
        %975 = vmatprep.subr.bf16.mxu0 0
        %976 = vmatpush1.bf16.msra.mxu0 0
        %977 = vmatprep.mubr.bf16.mxu0 0
        %978 = vmatmul.mubr.bf16.gmra.mrb[0].mxu0 %v879
        %v979 = vpop.f32.mrb[0].mxu0
        %v980 = vadd.f32 1e-06, %v979
        %v981 = vpop.f32.mrb[0].mxu0
        %v982 = vpop.f32.mrb[0].mxu0
        %v983 = vadd.f32 1e-06, %v982
        %v984 = vpop.f32.mrb[0].mxu0
        %985 = vmatprep.mubr.bf16.mxu0 0
        %986 = vmatmul.mubr.bf16.gmra.mrb[0].mxu0 %v880
        %v987 = vpop.f32.mrb[0].mxu0
        %v988 = vadd.f32 1e-06, %v987
        %v989 = vpop.f32.mrb[0].mxu0
        %v990 = vpop.f32.mrb[0].mxu0
        %v991 = vadd.f32 1e-06, %v990
        %v992 = vpop.f32.mrb[0].mxu0
        %993 = vdwg.mxu0
        %v994 = vlog2.pop %v980
        %v995 = vmul.f32 %v994, 0.6931472
        %v996 = vlog2.pop %v983
        %v997 = vmul.f32 %v996, 0.6931472
        %v998 = vlog2.pop %v988
        %v999 = vmul.f32 %v998, 0.6931472
        %v1000 = vlog2.pop %v991
        %v1001 = vmul.f32 %v1000, 0.6931472
        %v1002 = vmul.f32 %v995, %v594
        %v1003 = vmul.f32 %v997, %v595
        %v1004 = vmul.f32 %v999, %v596
        %v1005 = vmul.f32 %v1001, %v597
        %v1006 = vadd.f32 %v1002, %v1003
        %v1007 = vadd.f32 %v1006, %v1004
        %v1008 = vsel %vm606, %v1005, 0.0
        %v1009 = vadd.f32 %v1007, %v1008
        %v1010 = vrot.slane %v1009, 4
        %v1011 = vadd.f32 %v1009, %v1010
        %v1012 = vrot.slane %v1011, 2
        %v1013 = vadd.f32 %v1011, %v1012
        %v1014 = vrot.slane %v1013, 1
        %v1015 = vadd.f32 %v1013, %v1014
        %v1016 = vstv %s575
        %v1017 = vmul.f32 %v1015, %v1016
        %v1018 = vsub.f32 %v995, %v1017
        %v1019 = vsub.f32 %v997, %v1017
        %v1020 = vsub.f32 %v999, %v1017
        %v1021 = vsub.f32 %v1001, %v1017
        %v1022 = vmul.f32 %v1018, %v594
        %v1023 = vmul.f32 %v1019, %v595
        %v1024 = vmul.f32 %v1020, %v596
        %v1025 = vmul.f32 %v1021, %v597
        %v1026 = vmul.f32 %v1022, %v1022
        %v1027 = vmul.f32 %v1023, %v1023
        %v1028 = vmul.f32 %v1024, %v1024
        %v1029 = vmul.f32 %v1025, %v1025
        %v1030 = vadd.f32 %v1026, %v1027
        %v1031 = vadd.f32 %v1030, %v1028
        %v1032 = vsel %vm606, %v1029, 0.0
        %v1033 = vadd.f32 %v1031, %v1032
        %v1034 = vrot.slane %v1033, 4
        %v1035 = vadd.f32 %v1033, %v1034
        %v1036 = vrot.slane %v1035, 2
        %v1037 = vadd.f32 %v1035, %v1036
        %v1038 = vrot.slane %v1037, 1
        %v1039 = vadd.f32 %v1037, %v1038
        %v1040 = vstv %s579
        %v1041 = vmul.f32 %v1039, %v1040
        %v1042 = vrsqrt.pop %v1041
        %v1043 = vmul.f32 %v1041, %v1042
        %vm1044 = vcmp.eq.f32.partialorder %v1041, inf
        %v1045 = vsel %vm1044, %v1041, %v1043
        %vm1046 = vcmp.eq.f32.partialorder %v1041, 0.0
        %v1047 = vand.u32 %v1041, 2147483648
        %v1048 = vsel %vm1046, %v1047, %v1045
        %v1049 = vadd.f32 %v1048, 1e-05
        %v1050 = vrcp.pop %v1049
        %v1051 = vmul.f32 %v1022, %v1050
        %v1052 = vmul.f32 %v1023, %v1050
        %v1053 = vmul.f32 %v1024, %v1050
        %v1054 = vmul.f32 %v1025, %v1050
        %v1055 = vpack.c.bf16 %v1052, %v1051
        %v1056 = vpack.c.bf16 %v1054, %v1053
        %vm1057 = vsmask.f32 256
        %v1059 = vshrl.u32 %v1055, 16
        %v1061 = vrot.slane %v1059, 7
        %v1062 = vshll.u32 %v1055, 16
        %v1064 = vor.u32 %v1061, %v1062
        %v1066 = vshrl.u32 %v1056, 16
        %v1068 = vrot.slane %v1066, 7
        %v1069 = vshll.u32 %v1056, 16
        %v1071 = vor.u32 %v1068, %v1069
        %v1072 = vsel %vm1057, %v1061, %v1071
        %vm1075 = vcmask 1040384
        %vm1076 = vmand %vm1075, %vm1057
        %v1077 = vsel %vm1076, 0, %v1064
        %vm1078 = vsmask.f32 7424
        %v1079 = vrot.slane %v1062, 1
        %v1080 = vor.u32 %v1059, %v1079
        %v1081 = vrot.slane %v1069, 1
        %v1082 = vsel %vm1078, %v1080, %v1081
        %v1083 = vor.u32 %v1066, %v1081
        %v1087 = vsel %vm606, %v1083, 0
        %v1089 = vld [vmem:[#allocation9] sm:$0xf]
        %v1090 = vld [vmem:[#allocation9 + $0x4] sm:$0xf]
        %v1091 = vld [vmem:[#allocation9 + $0x8] sm:$0xf]
        %v1092 = vld [vmem:[#allocation9 + $0xc] sm:$0xf]
        %v1093 = vld [vmem:[#allocation9 + $0x10] sm:$0xf]
        %v1094 = vld [vmem:[#allocation9 + $0x14] sm:$0xf]
        %v1095 = vld [vmem:[#allocation9 + $0x18] sm:$0xf]
        %v1096 = vld [vmem:[#allocation9 + $0x1c] sm:$0xf]
        %v1097 = vld [vmem:[#allocation9 + $0x20] sm:$0xf]
        %v1098 = vld [vmem:[#allocation9 + $0x24] sm:$0xf]
        %v1099 = vld [vmem:[#allocation9 + $0x28] sm:$0xf]
        %v1100 = vld [vmem:[#allocation9 + $0x2c] sm:$0xf]
        %v1101 = vld [vmem:[#allocation9 + $0x30] sm:$0xf]
        %v1102 = vld [vmem:[#allocation9 + $0x34] sm:$0xf]
        %v1103 = vld [vmem:[#allocation9 + $0x38] sm:$0xf]
        %v1104 = vld [vmem:[#allocation9 + $0x3c] sm:$0xf]
        %s1105 = scalar_lea.vmem [#allocation9], 64
        %v1106 = vld [vmem:[%s1105] sm:$0xf]
        %v1107 = vld [vmem:[%s1105 + $0x4] sm:$0xf]
        %v1108 = vld [vmem:[%s1105 + $0x8] sm:$0xf]
        %v1109 = vld [vmem:[%s1105 + $0xc] sm:$0xf]
        %v1110 = vld [vmem:[%s1105 + $0x10] sm:$0xf]
        %v1111 = vld [vmem:[%s1105 + $0x14] sm:$0xf]
        %v1112 = vld [vmem:[%s1105 + $0x18] sm:$0xf]
        %v1113 = vld [vmem:[%s1105 + $0x1c] sm:$0xf]
        %v1114 = vld [vmem:[%s1105 + $0x20] sm:$0xf]
        %v1115 = vld [vmem:[%s1105 + $0x24] sm:$0xf]
        %v1116 = vld [vmem:[%s1105 + $0x28] sm:$0xf]
        %v1117 = vld [vmem:[%s1105 + $0x2c] sm:$0xf]
        %v1118 = vld [vmem:[%s1105 + $0x30] sm:$0xf]
        %v1119 = vld [vmem:[%s1105 + $0x34] sm:$0xf]
        %v1120 = vld [vmem:[%s1105 + $0x38] sm:$0xf]
        %v1121 = vld [vmem:[%s1105 + $0x3c] sm:$0xf]
        %v1138 = vunpack.c.l.b16 %v1106
        %v1139 = vunpack.c.l.b16 %v1107
        %v1140 = vunpack.c.l.b16 %v1108
        %v1141 = vunpack.c.l.b16 %v1109
        %v1142 = vunpack.c.l.b16 %v1110
        %v1143 = vunpack.c.l.b16 %v1111
        %v1144 = vunpack.c.l.b16 %v1112
        %v1145 = vunpack.c.l.b16 %v1113
        %v1146 = vunpack.c.l.b16 %v1114
        %v1147 = vunpack.c.l.b16 %v1115
        %v1148 = vunpack.c.l.b16 %v1116
        %v1149 = vunpack.c.l.b16 %v1117
        %v1150 = vunpack.c.l.b16 %v1118
        %v1151 = vunpack.c.l.b16 %v1119
        %v1152 = vunpack.c.l.b16 %v1120
        %v1153 = vunpack.c.l.b16 %v1121
        %v1154 = vpack.c.b16 %v1139, %v1138
        %v1155 = vpack.c.b16 %v1141, %v1140
        %v1156 = vpack.c.b16 %v1143, %v1142
        %v1157 = vpack.c.b16 %v1145, %v1144
        %v1158 = vpack.c.b16 %v1147, %v1146
        %v1159 = vpack.c.b16 %v1149, %v1148
        %v1160 = vpack.c.b16 %v1151, %v1150
        %v1161 = vpack.c.b16 %v1153, %v1152
        %1170 = vmatprep.subr.bf16.mxu0 0
        %1171 = vmatpush1.bf16.msra.mxu0 %v1154
        %1172 = vmatprep.subr.bf16.mxu0 0
        %1173 = vmatpush1.bf16.msra.mxu0 %v1155
        %1174 = vmatprep.subr.bf16.mxu0 0
        %1175 = vmatpush1.bf16.msra.mxu0 %v1156
        %1176 = vmatprep.subr.bf16.mxu0 0
        %1177 = vmatpush1.bf16.msra.mxu0 %v1157
        %1178 = vmatprep.subr.bf16.mxu0 0
        %1179 = vmatpush1.bf16.msra.mxu0 %v1158
        %1180 = vmatprep.subr.bf16.mxu0 0
        %1181 = vmatpush1.bf16.msra.mxu0 %v1159
        %1182 = vmatprep.subr.bf16.mxu0 0
        %1183 = vmatpush1.bf16.msra.mxu0 %v1160
        %1184 = vmatprep.subr.bf16.mxu0 0
        %1185 = vmatpush1.bf16.msra.mxu0 %v1161
        %1186 = vmatprep.subr.bf16.mxu0 0
        %1187 = vmatpush1.bf16.msra.mxu0 0
        %1188 = vmatprep.subr.bf16.mxu0 0
        %1189 = vmatpush1.bf16.msra.mxu0 0
        %1190 = vmatprep.subr.bf16.mxu0 0
        %1191 = vmatpush1.bf16.msra.mxu0 0
        %1192 = vmatprep.subr.bf16.mxu0 0
        %1193 = vmatpush1.bf16.msra.mxu0 0
        %1194 = vmatprep.subr.bf16.mxu0 0
        %1195 = vmatpush1.bf16.msra.mxu0 0
        %1196 = vmatprep.subr.bf16.mxu0 0
        %1197 = vmatpush1.bf16.msra.mxu0 0
        %1198 = vmatprep.subr.bf16.mxu0 0
        %1199 = vmatpush1.bf16.msra.mxu0 0
        %1200 = vmatprep.subr.bf16.mxu0 0
        %1201 = vmatpush1.bf16.msra.mxu0 0
        %1202 = vmatprep.mubr.bf16.mxu0 0
        %1203 = vmatmul.mubr.bf16.gmra.mrb[0].mxu0 %v1055
        %v1204 = vpop.f32.mrb[0].mxu0
        %v1205 = vadd.f32 0.0, %v1204
        %v1206 = vpop.f32.mrb[0].mxu0
        %v1207 = vpop.f32.mrb[0].mxu0
        %v1208 = vadd.f32 0.0, %v1207
        %v1209 = vpop.f32.mrb[0].mxu0
        %1210 = vmatprep.mubr.bf16.mxu0 0
        %1211 = vmatmul.mubr.bf16.gmra.mrb[0].mxu0 %v1056
        %v1212 = vpop.f32.mrb[0].mxu0
        %v1213 = vadd.f32 0.0, %v1212
        %v1214 = vpop.f32.mrb[0].mxu0
        %v1215 = vpop.f32.mrb[0].mxu0
        %v1216 = vadd.f32 0.0, %v1215
        %v1217 = vpop.f32.mrb[0].mxu0
        %1218 = vdwg.mxu0
        %v1235 = vunpack.c.l.b16 %v1089
        %v1236 = vunpack.c.l.b16 %v1090
        %v1237 = vunpack.c.l.b16 %v1091
        %v1238 = vunpack.c.l.b16 %v1092
        %v1239 = vunpack.c.l.b16 %v1093
        %v1240 = vunpack.c.l.b16 %v1094
        %v1241 = vunpack.c.l.b16 %v1095
        %v1242 = vunpack.c.l.b16 %v1096
        %v1243 = vunpack.c.l.b16 %v1097
        %v1244 = vunpack.c.l.b16 %v1098
        %v1245 = vunpack.c.l.b16 %v1099
        %v1246 = vunpack.c.l.b16 %v1100
        %v1247 = vunpack.c.l.b16 %v1101
        %v1248 = vunpack.c.l.b16 %v1102
        %v1249 = vunpack.c.l.b16 %v1103
        %v1250 = vunpack.c.l.b16 %v1104
        %v1251 = vpack.c.b16 %v1236, %v1235
        %v1252 = vpack.c.b16 %v1238, %v1237
        %v1253 = vpack.c.b16 %v1240, %v1239
        %v1254 = vpack.c.b16 %v1242, %v1241
        %v1255 = vpack.c.b16 %v1244, %v1243
        %v1256 = vpack.c.b16 %v1246, %v1245
        %v1257 = vpack.c.b16 %v1248, %v1247
        %v1258 = vpack.c.b16 %v1250, %v1249
        %1267 = vmatprep.subr.bf16.mxu0 0
        %1268 = vmatpush1.bf16.msra.mxu0 %v1251
        %1269 = vmatprep.subr.bf16.mxu0 0
        %1270 = vmatpush1.bf16.msra.mxu0 %v1252
        %1271 = vmatprep.subr.bf16.mxu0 0
        %1272 = vmatpush1.bf16.msra.mxu0 %v1253
        %1273 = vmatprep.subr.bf16.mxu0 0
        %1274 = vmatpush1.bf16.msra.mxu0 %v1254
        %1275 = vmatprep.subr.bf16.mxu0 0
        %1276 = vmatpush1.bf16.msra.mxu0 %v1255
        %1277 = vmatprep.subr.bf16.mxu0 0
        %1278 = vmatpush1.bf16.msra.mxu0 %v1256
        %1279 = vmatprep.subr.bf16.mxu0 0
        %1280 = vmatpush1.bf16.msra.mxu0 %v1257
        %1281 = vmatprep.subr.bf16.mxu0 0
        %1282 = vmatpush1.bf16.msra.mxu0 %v1258
        %1283 = vmatprep.subr.bf16.mxu0 0
        %1284 = vmatpush1.bf16.msra.mxu0 0
        %1285 = vmatprep.subr.bf16.mxu0 0
        %1286 = vmatpush1.bf16.msra.mxu0 0
        %1287 = vmatprep.subr.bf16.mxu0 0
        %1288 = vmatpush1.bf16.msra.mxu0 0
        %1289 = vmatprep.subr.bf16.mxu0 0
        %1290 = vmatpush1.bf16.msra.mxu0 0
        %1291 = vmatprep.subr.bf16.mxu0 0
        %1292 = vmatpush1.bf16.msra.mxu0 0
        %1293 = vmatprep.subr.bf16.mxu0 0
        %1294 = vmatpush1.bf16.msra.mxu0 0
        %1295 = vmatprep.subr.bf16.mxu0 0
        %1296 = vmatpush1.bf16.msra.mxu0 0
        %1297 = vmatprep.subr.bf16.mxu0 0
        %1298 = vmatpush1.bf16.msra.mxu0 0
        %1299 = vmatprep.mubr.bf16.mxu0 0
        %1300 = vmatmul.mubr.bf16.gmra.mrb[0].mxu0 %v1077
        %v1301 = vpop.f32.mrb[0].mxu0
        %v1302 = vadd.f32 %v1205, %v1301
        %v1303 = vpop.f32.mrb[0].mxu0
        %v1304 = vpop.f32.mrb[0].mxu0
        %v1305 = vadd.f32 %v1208, %v1304
        %v1306 = vpop.f32.mrb[0].mxu0
        %1307 = vmatprep.mubr.bf16.mxu0 0
        %1308 = vmatmul.mubr.bf16.gmra.mrb[0].mxu0 %v1072
        %v1309 = vpop.f32.mrb[0].mxu0
        %v1310 = vadd.f32 %v1213, %v1309
        %v1311 = vpop.f32.mrb[0].mxu0
        %v1312 = vpop.f32.mrb[0].mxu0
        %v1313 = vadd.f32 %v1216, %v1312
        %v1314 = vpop.f32.mrb[0].mxu0
        %1315 = vdwg.mxu0
        %s1316 = scalar_lea.vmem [#allocation9], 128
        %v1317 = vld [vmem:[%s1316] sm:$0xf]
        %v1318 = vld [vmem:[%s1316 + $0x4] sm:$0xf]
        %v1319 = vld [vmem:[%s1316 + $0x8] sm:$0xf]
        %v1320 = vld [vmem:[%s1316 + $0xc] sm:$0xf]
        %v1321 = vld [vmem:[%s1316 + $0x10] sm:$0xf]
        %v1322 = vld [vmem:[%s1316 + $0x14] sm:$0xf]
        %v1323 = vld [vmem:[%s1316 + $0x18] sm:$0xf]
        %v1324 = vld [vmem:[%s1316 + $0x1c] sm:$0xf]
        %v1325 = vld [vmem:[%s1316 + $0x20] sm:$0xf]
        %v1326 = vld [vmem:[%s1316 + $0x24] sm:$0xf]
        %v1327 = vld [vmem:[%s1316 + $0x28] sm:$0xf]
        %v1328 = vld [vmem:[%s1316 + $0x2c] sm:$0xf]
        %v1329 = vld [vmem:[%s1316 + $0x30] sm:$0xf]
        %v1330 = vld [vmem:[%s1316 + $0x34] sm:$0xf]
        %v1331 = vld [vmem:[%s1316 + $0x38] sm:$0xf]
        %v1332 = vld [vmem:[%s1316 + $0x3c] sm:$0xf]
        %v1349 = vunpack.c.l.b16 %v1317
        %v1350 = vunpack.c.l.b16 %v1318
        %v1351 = vunpack.c.l.b16 %v1319
        %v1352 = vunpack.c.l.b16 %v1320
        %v1353 = vunpack.c.l.b16 %v1321
        %v1354 = vunpack.c.l.b16 %v1322
        %v1355 = vunpack.c.l.b16 %v1323
        %v1356 = vunpack.c.l.b16 %v1324
        %v1357 = vunpack.c.l.b16 %v1325
        %v1358 = vunpack.c.l.b16 %v1326
        %v1359 = vunpack.c.l.b16 %v1327
        %v1360 = vunpack.c.l.b16 %v1328
        %v1361 = vunpack.c.l.b16 %v1329
        %v1362 = vunpack.c.l.b16 %v1330
        %v1363 = vunpack.c.l.b16 %v1331
        %v1364 = vunpack.c.l.b16 %v1332
        %v1365 = vpack.c.b16 %v1350, %v1349
        %v1366 = vpack.c.b16 %v1352, %v1351
        %v1367 = vpack.c.b16 %v1354, %v1353
        %v1368 = vpack.c.b16 %v1356, %v1355
        %v1369 = vpack.c.b16 %v1358, %v1357
        %v1370 = vpack.c.b16 %v1360, %v1359
        %v1371 = vpack.c.b16 %v1362, %v1361
        %v1372 = vpack.c.b16 %v1364, %v1363
        %1381 = vmatprep.subr.bf16.mxu0 0
        %1382 = vmatpush1.bf16.msra.mxu0 %v1365
        %1383 = vmatprep.subr.bf16.mxu0 0
        %1384 = vmatpush1.bf16.msra.mxu0 %v1366
        %1385 = vmatprep.subr.bf16.mxu0 0
        %1386 = vmatpush1.bf16.msra.mxu0 %v1367
        %1387 = vmatprep.subr.bf16.mxu0 0
        %1388 = vmatpush1.bf16.msra.mxu0 %v1368
        %1389 = vmatprep.subr.bf16.mxu0 0
        %1390 = vmatpush1.bf16.msra.mxu0 %v1369
        %1391 = vmatprep.subr.bf16.mxu0 0
        %1392 = vmatpush1.bf16.msra.mxu0 %v1370
        %1393 = vmatprep.subr.bf16.mxu0 0
        %1394 = vmatpush1.bf16.msra.mxu0 %v1371
        %1395 = vmatprep.subr.bf16.mxu0 0
        %1396 = vmatpush1.bf16.msra.mxu0 %v1372
        %1397 = vmatprep.subr.bf16.mxu0 0
        %1398 = vmatpush1.bf16.msra.mxu0 0
        %1399 = vmatprep.subr.bf16.mxu0 0
        %1400 = vmatpush1.bf16.msra.mxu0 0
        %1401 = vmatprep.subr.bf16.mxu0 0
        %1402 = vmatpush1.bf16.msra.mxu0 0
        %1403 = vmatprep.subr.bf16.mxu0 0
        %1404 = vmatpush1.bf16.msra.mxu0 0
        %1405 = vmatprep.subr.bf16.mxu0 0
        %1406 = vmatpush1.bf16.msra.mxu0 0
        %1407 = vmatprep.subr.bf16.mxu0 0
        %1408 = vmatpush1.bf16.msra.mxu0 0
        %1409 = vmatprep.subr.bf16.mxu0 0
        %1410 = vmatpush1.bf16.msra.mxu0 0
        %1411 = vmatprep.subr.bf16.mxu0 0
        %1412 = vmatpush1.bf16.msra.mxu0 0
        %1413 = vmatprep.mubr.bf16.mxu0 0
        %1414 = vmatmul.mubr.bf16.gmra.mrb[0].mxu0 %v1082
        %v1415 = vpop.f32.mrb[0].mxu0
        %v1416 = vadd.f32 0.0, %v1415
        %v1417 = vpop.f32.mrb[0].mxu0
        %v1418 = vpop.f32.mrb[0].mxu0
        %v1419 = vadd.f32 0.0, %v1418
        %v1420 = vpop.f32.mrb[0].mxu0
        %1421 = vmatprep.mubr.bf16.mxu0 0
        %1422 = vmatmul.mubr.bf16.gmra.mrb[0].mxu0 %v1087
        %v1423 = vpop.f32.mrb[0].mxu0
        %v1424 = vadd.f32 0.0, %v1423
        %v1425 = vpop.f32.mrb[0].mxu0
        %v1426 = vpop.f32.mrb[0].mxu0
        %v1427 = vadd.f32 0.0, %v1426
        %v1428 = vpop.f32.mrb[0].mxu0
        %1429 = vdwg.mxu0
        %v1430 = vadd.f32 %v1302, %v1416
        %v1431 = vadd.f32 %v1305, %v1419
        %v1432 = vadd.f32 %v1310, %v1424
        %v1433 = vadd.f32 %v1313, %v1427
        %v1434 = vld [vmem:[%s5] sm:$0x1]
        %v1436 = vlaneseq
        %v1437 = vshrl.u32 %v1436, 7
        %v1438 = vsub.s32 0, %v1437
        %v1439 = vrot.slane %v1434, %v1438
        %v1441 = vadd.f32 %v1430, %v1439
        %v1442 = vadd.f32 %v1431, %v1439
        %v1443 = vadd.f32 %v1432, %v1439
        %v1444 = vadd.f32 %v1433, %v1439
        %v1445 = vmax.f32 %v1441, 0.0
        %v1446 = vmax.f32 %v1442, 0.0
        %v1447 = vmax.f32 %v1443, 0.0
        %v1448 = vmax.f32 %v1444, 0.0
        %v1449 = vmul.f32 %v1445, %v594
        %v1450 = vmul.f32 %v1446, %v595
        %v1451 = vmul.f32 %v1447, %v596
        %v1452 = vmul.f32 %v1448, %v597
        %v1453 = vpack.c.bf16 %v1450, %v1449
        %v1454 = vpack.c.bf16 %v1452, %v1451
        %v1456 = vshrl.u32 %v1453, 16
        %v1458 = vrot.slane %v1456, 7
        %v1459 = vshll.u32 %v1453, 16
        %v1461 = vor.u32 %v1458, %v1459
        %v1463 = vshrl.u32 %v1454, 16
        %v1465 = vrot.slane %v1463, 7
        %v1466 = vshll.u32 %v1454, 16
        %v1468 = vor.u32 %v1465, %v1466
        %v1469 = vsel %vm1057, %v1458, %v1468
        %v1472 = vsel %vm1076, 0, %v1461
        %v1473 = vrot.slane %v1459, 1
        %v1474 = vor.u32 %v1456, %v1473
        %v1475 = vrot.slane %v1466, 1
        %v1476 = vsel %vm1078, %v1474, %v1475
        %v1477 = vor.u32 %v1463, %v1475
        %v1480 = vsel %vm606, %v1477, 0
        %v1482 = vld [vmem:[#allocation10] sm:$0xf]
        %v1483 = vld [vmem:[#allocation10 + $0x4] sm:$0xf]
        %v1484 = vld [vmem:[#allocation10 + $0x8] sm:$0xf]
        %v1485 = vld [vmem:[#allocation10 + $0xc] sm:$0xf]
        %v1486 = vld [vmem:[#allocation10 + $0x10] sm:$0xf]
        %v1487 = vld [vmem:[#allocation10 + $0x14] sm:$0xf]
        %v1488 = vld [vmem:[#allocation10 + $0x18] sm:$0xf]
        %v1489 = vld [vmem:[#allocation10 + $0x1c] sm:$0xf]
        %v1490 = vld [vmem:[#allocation10 + $0x20] sm:$0xf]
        %v1491 = vld [vmem:[#allocation10 + $0x24] sm:$0xf]
        %v1492 = vld [vmem:[#allocation10 + $0x28] sm:$0xf]
        %v1493 = vld [vmem:[#allocation10 + $0x2c] sm:$0xf]
        %v1494 = vld [vmem:[#allocation10 + $0x30] sm:$0xf]
        %v1495 = vld [vmem:[#allocation10 + $0x34] sm:$0xf]
        %v1496 = vld [vmem:[#allocation10 + $0x38] sm:$0xf]
        %v1497 = vld [vmem:[#allocation10 + $0x3c] sm:$0xf]
        %s1498 = scalar_lea.vmem [#allocation10], 64
        %v1499 = vld [vmem:[%s1498] sm:$0xf]
        %v1500 = vld [vmem:[%s1498 + $0x4] sm:$0xf]
        %v1501 = vld [vmem:[%s1498 + $0x8] sm:$0xf]
        %v1502 = vld [vmem:[%s1498 + $0xc] sm:$0xf]
        %v1503 = vld [vmem:[%s1498 + $0x10] sm:$0xf]
        %v1504 = vld [vmem:[%s1498 + $0x14] sm:$0xf]
        %v1505 = vld [vmem:[%s1498 + $0x18] sm:$0xf]
        %v1506 = vld [vmem:[%s1498 + $0x1c] sm:$0xf]
        %v1507 = vld [vmem:[%s1498 + $0x20] sm:$0xf]
        %v1508 = vld [vmem:[%s1498 + $0x24] sm:$0xf]
        %v1509 = vld [vmem:[%s1498 + $0x28] sm:$0xf]
        %v1510 = vld [vmem:[%s1498 + $0x2c] sm:$0xf]
        %v1511 = vld [vmem:[%s1498 + $0x30] sm:$0xf]
        %v1512 = vld [vmem:[%s1498 + $0x34] sm:$0xf]
        %v1513 = vld [vmem:[%s1498 + $0x38] sm:$0xf]
        %v1514 = vld [vmem:[%s1498 + $0x3c] sm:$0xf]
        %v1531 = vunpack.c.l.b16 %v1499
        %v1532 = vunpack.c.l.b16 %v1500
        %v1533 = vunpack.c.l.b16 %v1501
        %v1534 = vunpack.c.l.b16 %v1502
        %v1535 = vunpack.c.l.b16 %v1503
        %v1536 = vunpack.c.l.b16 %v1504
        %v1537 = vunpack.c.l.b16 %v1505
        %v1538 = vunpack.c.l.b16 %v1506
        %v1539 = vunpack.c.l.b16 %v1507
        %v1540 = vunpack.c.l.b16 %v1508
        %v1541 = vunpack.c.l.b16 %v1509
        %v1542 = vunpack.c.l.b16 %v1510
        %v1543 = vunpack.c.l.b16 %v1511
        %v1544 = vunpack.c.l.b16 %v1512
        %v1545 = vunpack.c.l.b16 %v1513
        %v1546 = vunpack.c.l.b16 %v1514
        %v1547 = vpack.c.b16 %v1532, %v1531
        %v1548 = vpack.c.b16 %v1534, %v1533
        %v1549 = vpack.c.b16 %v1536, %v1535
        %v1550 = vpack.c.b16 %v1538, %v1537
        %v1551 = vpack.c.b16 %v1540, %v1539
        %v1552 = vpack.c.b16 %v1542, %v1541
        %v1553 = vpack.c.b16 %v1544, %v1543
        %v1554 = vpack.c.b16 %v1546, %v1545
        %1563 = vmatprep.subr.bf16.mxu0 0
        %1564 = vmatpush1.bf16.msra.mxu0 %v1547
        %1565 = vmatprep.subr.bf16.mxu0 0
        %1566 = vmatpush1.bf16.msra.mxu0 %v1548
        %1567 = vmatprep.subr.bf16.mxu0 0
        %1568 = vmatpush1.bf16.msra.mxu0 %v1549
        %1569 = vmatprep.subr.bf16.mxu0 0
        %1570 = vmatpush1.bf16.msra.mxu0 %v1550
        %1571 = vmatprep.subr.bf16.mxu0 0
        %1572 = vmatpush1.bf16.msra.mxu0 %v1551
        %1573 = vmatprep.subr.bf16.mxu0 0
        %1574 = vmatpush1.bf16.msra.mxu0 %v1552
        %1575 = vmatprep.subr.bf16.mxu0 0
        %1576 = vmatpush1.bf16.msra.mxu0 %v1553
        %1577 = vmatprep.subr.bf16.mxu0 0
        %1578 = vmatpush1.bf16.msra.mxu0 %v1554
        %1579 = vmatprep.subr.bf16.mxu0 0
        %1580 = vmatpush1.bf16.msra.mxu0 0
        %1581 = vmatprep.subr.bf16.mxu0 0
        %1582 = vmatpush1.bf16.msra.mxu0 0
        %1583 = vmatprep.subr.bf16.mxu0 0
        %1584 = vmatpush1.bf16.msra.mxu0 0
        %1585 = vmatprep.subr.bf16.mxu0 0
        %1586 = vmatpush1.bf16.msra.mxu0 0
        %1587 = vmatprep.subr.bf16.mxu0 0
        %1588 = vmatpush1.bf16.msra.mxu0 0
        %1589 = vmatprep.subr.bf16.mxu0 0
        %1590 = vmatpush1.bf16.msra.mxu0 0
        %1591 = vmatprep.subr.bf16.mxu0 0
        %1592 = vmatpush1.bf16.msra.mxu0 0
        %1593 = vmatprep.subr.bf16.mxu0 0
        %1594 = vmatpush1.bf16.msra.mxu0 0
        %1595 = vmatprep.mubr.bf16.mxu0 0
        %1596 = vmatmul.mubr.bf16.gmra.mrb[0].mxu0 %v1453
        %v1597 = vpop.f32.mrb[0].mxu0
        %v1598 = vadd.f32 0.0, %v1597
        %v1599 = vpop.f32.mrb[0].mxu0
        %v1600 = vpop.f32.mrb[0].mxu0
        %v1601 = vadd.f32 0.0, %v1600
        %v1602 = vpop.f32.mrb[0].mxu0
        %1603 = vmatprep.mubr.bf16.mxu0 0
        %1604 = vmatmul.mubr.bf16.gmra.mrb[0].mxu0 %v1454
        %v1605 = vpop.f32.mrb[0].mxu0
        %v1606 = vadd.f32 0.0, %v1605
        %v1607 = vpop.f32.mrb[0].mxu0
        %v1608 = vpop.f32.mrb[0].mxu0
        %v1609 = vadd.f32 0.0, %v1608
        %v1610 = vpop.f32.mrb[0].mxu0
        %1611 = vdwg.mxu0
        %v1628 = vunpack.c.l.b16 %v1482
        %v1629 = vunpack.c.l.b16 %v1483
        %v1630 = vunpack.c.l.b16 %v1484
        %v1631 = vunpack.c.l.b16 %v1485
        %v1632 = vunpack.c.l.b16 %v1486
        %v1633 = vunpack.c.l.b16 %v1487
        %v1634 = vunpack.c.l.b16 %v1488
        %v1635 = vunpack.c.l.b16 %v1489
        %v1636 = vunpack.c.l.b16 %v1490
        %v1637 = vunpack.c.l.b16 %v1491
        %v1638 = vunpack.c.l.b16 %v1492
        %v1639 = vunpack.c.l.b16 %v1493
        %v1640 = vunpack.c.l.b16 %v1494
        %v1641 = vunpack.c.l.b16 %v1495
        %v1642 = vunpack.c.l.b16 %v1496
        %v1643 = vunpack.c.l.b16 %v1497
        %v1644 = vpack.c.b16 %v1629, %v1628
        %v1645 = vpack.c.b16 %v1631, %v1630
        %v1646 = vpack.c.b16 %v1633, %v1632
        %v1647 = vpack.c.b16 %v1635, %v1634
        %v1648 = vpack.c.b16 %v1637, %v1636
        %v1649 = vpack.c.b16 %v1639, %v1638
        %v1650 = vpack.c.b16 %v1641, %v1640
        %v1651 = vpack.c.b16 %v1643, %v1642
        %1660 = vmatprep.subr.bf16.mxu0 0
        %1661 = vmatpush1.bf16.msra.mxu0 %v1644
        %1662 = vmatprep.subr.bf16.mxu0 0
        %1663 = vmatpush1.bf16.msra.mxu0 %v1645
        %1664 = vmatprep.subr.bf16.mxu0 0
        %1665 = vmatpush1.bf16.msra.mxu0 %v1646
        %1666 = vmatprep.subr.bf16.mxu0 0
        %1667 = vmatpush1.bf16.msra.mxu0 %v1647
        %1668 = vmatprep.subr.bf16.mxu0 0
        %1669 = vmatpush1.bf16.msra.mxu0 %v1648
        %1670 = vmatprep.subr.bf16.mxu0 0
        %1671 = vmatpush1.bf16.msra.mxu0 %v1649
        %1672 = vmatprep.subr.bf16.mxu0 0
        %1673 = vmatpush1.bf16.msra.mxu0 %v1650
        %1674 = vmatprep.subr.bf16.mxu0 0
        %1675 = vmatpush1.bf16.msra.mxu0 %v1651
        %1676 = vmatprep.subr.bf16.mxu0 0
        %1677 = vmatpush1.bf16.msra.mxu0 0
        %1678 = vmatprep.subr.bf16.mxu0 0
        %1679 = vmatpush1.bf16.msra.mxu0 0
        %1680 = vmatprep.subr.bf16.mxu0 0
        %1681 = vmatpush1.bf16.msra.mxu0 0
        %1682 = vmatprep.subr.bf16.mxu0 0
        %1683 = vmatpush1.bf16.msra.mxu0 0
        %1684 = vmatprep.subr.bf16.mxu0 0
        %1685 = vmatpush1.bf16.msra.mxu0 0
        %1686 = vmatprep.subr.bf16.mxu0 0
        %1687 = vmatpush1.bf16.msra.mxu0 0
        %1688 = vmatprep.subr.bf16.mxu0 0
        %1689 = vmatpush1.bf16.msra.mxu0 0
        %1690 = vmatprep.subr.bf16.mxu0 0
        %1691 = vmatpush1.bf16.msra.mxu0 0
        %1692 = vmatprep.mubr.bf16.mxu0 0
        %1693 = vmatmul.mubr.bf16.gmra.mrb[0].mxu0 %v1472
        %v1694 = vpop.f32.mrb[0].mxu0
        %v1695 = vadd.f32 %v1598, %v1694
        %v1696 = vpop.f32.mrb[0].mxu0
        %v1697 = vpop.f32.mrb[0].mxu0
        %v1698 = vadd.f32 %v1601, %v1697
        %v1699 = vpop.f32.mrb[0].mxu0
        %1700 = vmatprep.mubr.bf16.mxu0 0
        %1701 = vmatmul.mubr.bf16.gmra.mrb[0].mxu0 %v1469
        %v1702 = vpop.f32.mrb[0].mxu0
        %v1703 = vadd.f32 %v1606, %v1702
        %v1704 = vpop.f32.mrb[0].mxu0
        %v1705 = vpop.f32.mrb[0].mxu0
        %v1706 = vadd.f32 %v1609, %v1705
        %v1707 = vpop.f32.mrb[0].mxu0
        %1708 = vdwg.mxu0
        %s1709 = scalar_lea.vmem [#allocation10], 128
        %v1710 = vld [vmem:[%s1709] sm:$0xf]
        %v1711 = vld [vmem:[%s1709 + $0x4] sm:$0xf]
        %v1712 = vld [vmem:[%s1709 + $0x8] sm:$0xf]
        %v1713 = vld [vmem:[%s1709 + $0xc] sm:$0xf]
        %v1714 = vld [vmem:[%s1709 + $0x10] sm:$0xf]
        %v1715 = vld [vmem:[%s1709 + $0x14] sm:$0xf]
        %v1716 = vld [vmem:[%s1709 + $0x18] sm:$0xf]
        %v1717 = vld [vmem:[%s1709 + $0x1c] sm:$0xf]
        %v1718 = vld [vmem:[%s1709 + $0x20] sm:$0xf]
        %v1719 = vld [vmem:[%s1709 + $0x24] sm:$0xf]
        %v1720 = vld [vmem:[%s1709 + $0x28] sm:$0xf]
        %v1721 = vld [vmem:[%s1709 + $0x2c] sm:$0xf]
        %v1722 = vld [vmem:[%s1709 + $0x30] sm:$0xf]
        %v1723 = vld [vmem:[%s1709 + $0x34] sm:$0xf]
        %v1724 = vld [vmem:[%s1709 + $0x38] sm:$0xf]
        %v1725 = vld [vmem:[%s1709 + $0x3c] sm:$0xf]
        %v1742 = vunpack.c.l.b16 %v1710
        %v1743 = vunpack.c.l.b16 %v1711
        %v1744 = vunpack.c.l.b16 %v1712
        %v1745 = vunpack.c.l.b16 %v1713
        %v1746 = vunpack.c.l.b16 %v1714
        %v1747 = vunpack.c.l.b16 %v1715
        %v1748 = vunpack.c.l.b16 %v1716
        %v1749 = vunpack.c.l.b16 %v1717
        %v1750 = vunpack.c.l.b16 %v1718
        %v1751 = vunpack.c.l.b16 %v1719
        %v1752 = vunpack.c.l.b16 %v1720
        %v1753 = vunpack.c.l.b16 %v1721
        %v1754 = vunpack.c.l.b16 %v1722
        %v1755 = vunpack.c.l.b16 %v1723
        %v1756 = vunpack.c.l.b16 %v1724
        %v1757 = vunpack.c.l.b16 %v1725
        %v1758 = vpack.c.b16 %v1743, %v1742
        %v1759 = vpack.c.b16 %v1745, %v1744
        %v1760 = vpack.c.b16 %v1747, %v1746
        %v1761 = vpack.c.b16 %v1749, %v1748
        %v1762 = vpack.c.b16 %v1751, %v1750
        %v1763 = vpack.c.b16 %v1753, %v1752
        %v1764 = vpack.c.b16 %v1755, %v1754
        %v1765 = vpack.c.b16 %v1757, %v1756
        %1774 = vmatprep.subr.bf16.mxu0 0
        %1775 = vmatpush1.bf16.msra.mxu0 %v1758
        %1776 = vmatprep.subr.bf16.mxu0 0
        %1777 = vmatpush1.bf16.msra.mxu0 %v1759
        %1778 = vmatprep.subr.bf16.mxu0 0
        %1779 = vmatpush1.bf16.msra.mxu0 %v1760
        %1780 = vmatprep.subr.bf16.mxu0 0
        %1781 = vmatpush1.bf16.msra.mxu0 %v1761
        %1782 = vmatprep.subr.bf16.mxu0 0
        %1783 = vmatpush1.bf16.msra.mxu0 %v1762
        %1784 = vmatprep.subr.bf16.mxu0 0
        %1785 = vmatpush1.bf16.msra.mxu0 %v1763
        %1786 = vmatprep.subr.bf16.mxu0 0
        %1787 = vmatpush1.bf16.msra.mxu0 %v1764
        %1788 = vmatprep.subr.bf16.mxu0 0
        %1789 = vmatpush1.bf16.msra.mxu0 %v1765
        %1790 = vmatprep.subr.bf16.mxu0 0
        %1791 = vmatpush1.bf16.msra.mxu0 0
        %1792 = vmatprep.subr.bf16.mxu0 0
        %1793 = vmatpush1.bf16.msra.mxu0 0
        %1794 = vmatprep.subr.bf16.mxu0 0
        %1795 = vmatpush1.bf16.msra.mxu0 0
        %1796 = vmatprep.subr.bf16.mxu0 0
        %1797 = vmatpush1.bf16.msra.mxu0 0
        %1798 = vmatprep.subr.bf16.mxu0 0
        %1799 = vmatpush1.bf16.msra.mxu0 0
        %1800 = vmatprep.subr.bf16.mxu0 0
        %1801 = vmatpush1.bf16.msra.mxu0 0
        %1802 = vmatprep.subr.bf16.mxu0 0
        %1803 = vmatpush1.bf16.msra.mxu0 0
        %1804 = vmatprep.subr.bf16.mxu0 0
        %1805 = vmatpush1.bf16.msra.mxu0 0
        %1806 = vmatprep.mubr.bf16.mxu0 0
        %1807 = vmatmul.mubr.bf16.gmra.mrb[0].mxu0 %v1476
        %v1808 = vpop.f32.mrb[0].mxu0
        %v1809 = vadd.f32 0.0, %v1808
        %v1810 = vpop.f32.mrb[0].mxu0
        %v1811 = vpop.f32.mrb[0].mxu0
        %v1812 = vadd.f32 0.0, %v1811
        %v1813 = vpop.f32.mrb[0].mxu0
        %1814 = vmatprep.mubr.bf16.mxu0 0
        %1815 = vmatmul.mubr.bf16.gmra.mrb[0].mxu0 %v1480
        %v1816 = vpop.f32.mrb[0].mxu0
        %v1817 = vadd.f32 0.0, %v1816
        %v1818 = vpop.f32.mrb[0].mxu0
        %v1819 = vpop.f32.mrb[0].mxu0
        %v1820 = vadd.f32 0.0, %v1819
        %v1821 = vpop.f32.mrb[0].mxu0
        %1822 = vdwg.mxu0
        %v1823 = vadd.f32 %v1695, %v1809
        %v1824 = vadd.f32 %v1698, %v1812
        %v1825 = vadd.f32 %v1703, %v1817
        %v1826 = vadd.f32 %v1706, %v1820
        %v1827 = vld [vmem:[%s7] sm:$0x1]
        %v1829 = vlaneseq
        %v1830 = vshrl.u32 %v1829, 7
        %v1831 = vsub.s32 0, %v1830
        %v1832 = vrot.slane %v1827, %v1831
        %v1834 = vadd.f32 %v1823, %v1832
        %v1835 = vadd.f32 %v1824, %v1832
        %v1836 = vadd.f32 %v1825, %v1832
        %v1837 = vadd.f32 %v1826, %v1832
        %v1838 = vmax.f32 %v1834, 0.0
        %v1839 = vmax.f32 %v1835, 0.0
        %v1840 = vmax.f32 %v1836, 0.0
        %v1841 = vmax.f32 %v1837, 0.0
        %v1842 = vmul.f32 %v1838, %v594
        %v1843 = vmul.f32 %v1839, %v595
        %v1844 = vmul.f32 %v1840, %v596
        %v1845 = vmul.f32 %v1841, %v597
        %v1846 = vpack.c.bf16 %v1843, %v1842
        %v1847 = vpack.c.bf16 %v1845, %v1844
        %v1848 = vld [vmem:[%s8] sm:$0xff]
        %v1849 = vld [vmem:[%s8 + $0x8] sm:$0xff]
        %v1850 = vld [vmem:[%s8 + $0x10] sm:$0xff]
        %v1851 = vld [vmem:[%s8 + $0x18] sm:$0xff]
        %v1852 = vld [vmem:[%s8 + $0x20] sm:$0xff]
        %v1853 = vld [vmem:[%s8 + $0x28] sm:$0xff]
        %v1854 = vld [vmem:[%s8 + $0x30] sm:$0xff]
        %v1855 = vld [vmem:[%s8 + $0x38] sm:$0xff]
        %v1856 = vld [vmem:[%s8 + $0x40] sm:$0xff]
        %v1857 = vld [vmem:[%s8 + $0x48] sm:$0xff]
        %v1858 = vld [vmem:[%s8 + $0x50] sm:$0xff]
        %v1859 = vld [vmem:[%s8 + $0x58] sm:$0xff]
        %v1860 = vld [vmem:[%s8 + $0x60] sm:$0xff]
        %v1861 = vld [vmem:[%s8 + $0x68] sm:$0xff]
        %v1862 = vld [vmem:[%s8 + $0x70] sm:$0xff]
        %v1863 = vld [vmem:[%s8 + $0x78] sm:$0xff]
        %v1864 = vld [vmem:[%s9] sm:$0x3]
        %v1866 = vlaneseq
        %v1867 = vshrl.u32 %v1866, 7
        %v1868 = vsub.s32 0, %v1867
        %v1869 = vrot.slane %v1864, %v1868
        %v1870 = vlaneseq
        %v1871 = vshrl.u32 %v1870, 7
        %v1872 = vsub.s32 1, %v1871
        %v1873 = vrot.slane %v1864, %v1872
        %v1892 = vunpack.c.l.b16 %v1848
        %v1893 = vunpack.c.h.b16 %v1848
        %v1894 = vunpack.c.l.b16 %v1849
        %v1895 = vunpack.c.h.b16 %v1849
        %v1896 = vunpack.c.l.b16 %v1850
        %v1897 = vunpack.c.h.b16 %v1850
        %v1898 = vunpack.c.l.b16 %v1851
        %v1899 = vunpack.c.h.b16 %v1851
        %v1900 = vunpack.c.l.b16 %v1852
        %v1901 = vunpack.c.h.b16 %v1852
        %v1902 = vunpack.c.l.b16 %v1853
        %v1903 = vunpack.c.h.b16 %v1853
        %v1904 = vunpack.c.l.b16 %v1854
        %v1905 = vunpack.c.h.b16 %v1854
        %v1906 = vunpack.c.l.b16 %v1855
        %v1907 = vunpack.c.h.b16 %v1855
        %v1908 = vunpack.c.l.b16 %v1856
        %v1909 = vunpack.c.h.b16 %v1856
        %v1910 = vunpack.c.l.b16 %v1857
        %v1911 = vunpack.c.h.b16 %v1857
        %v1912 = vunpack.c.l.b16 %v1858
        %v1913 = vunpack.c.h.b16 %v1858
        %v1914 = vunpack.c.l.b16 %v1859
        %v1915 = vunpack.c.h.b16 %v1859
        %v1916 = vunpack.c.l.b16 %v1860
        %v1917 = vunpack.c.h.b16 %v1860
        %v1918 = vunpack.c.l.b16 %v1861
        %v1919 = vunpack.c.h.b16 %v1861
        %v1920 = vunpack.c.l.b16 %v1862
        %v1921 = vunpack.c.h.b16 %v1862
        %v1922 = vunpack.c.l.b16 %v1863
        %v1923 = vunpack.c.h.b16 %v1863
        %v1924 = vpack.c.b16 %v1894, %v1892
        %v1925 = vpack.c.b16 %v1895, %v1893
        %v1926 = vpack.c.b16 %v1898, %v1896
        %v1927 = vpack.c.b16 %v1899, %v1897
        %v1928 = vpack.c.b16 %v1902, %v1900
        %v1929 = vpack.c.b16 %v1903, %v1901
        %v1930 = vpack.c.b16 %v1906, %v1904
        %v1931 = vpack.c.b16 %v1907, %v1905
        %v1932 = vpack.c.b16 %v1910, %v1908
        %v1933 = vpack.c.b16 %v1911, %v1909
        %v1934 = vpack.c.b16 %v1914, %v1912
        %v1935 = vpack.c.b16 %v1915, %v1913
        %v1936 = vpack.c.b16 %v1918, %v1916
        %v1937 = vpack.c.b16 %v1919, %v1917
        %v1938 = vpack.c.b16 %v1922, %v1920
        %v1939 = vpack.c.b16 %v1923, %v1921
        %1956 = vmatprep.subr.bf16.mxu0 %v1925
        %1957 = vmatpush1.bf16.msra.mxu0 %v1924
        %1958 = vmatprep.subr.bf16.mxu0 %v1927
        %1959 = vmatpush1.bf16.msra.mxu0 %v1926
        %1960 = vmatprep.subr.bf16.mxu0 %v1929
        %1961 = vmatpush1.bf16.msra.mxu0 %v1928
        %1962 = vmatprep.subr.bf16.mxu0 %v1931
        %1963 = vmatpush1.bf16.msra.mxu0 %v1930
        %1964 = vmatprep.subr.bf16.mxu0 %v1933
        %1965 = vmatpush1.bf16.msra.mxu0 %v1932
        %1966 = vmatprep.subr.bf16.mxu0 %v1935
        %1967 = vmatpush1.bf16.msra.mxu0 %v1934
        %1968 = vmatprep.subr.bf16.mxu0 %v1937
        %1969 = vmatpush1.bf16.msra.mxu0 %v1936
        %1970 = vmatprep.subr.bf16.mxu0 %v1939
        %1971 = vmatpush1.bf16.msra.mxu0 %v1938
        %1972 = vmatprep.subr.bf16.mxu0 0
        %1973 = vmatpush1.bf16.msra.mxu0 0
        %1974 = vmatprep.subr.bf16.mxu0 0
        %1975 = vmatpush1.bf16.msra.mxu0 0
        %1976 = vmatprep.subr.bf16.mxu0 0
        %1977 = vmatpush1.bf16.msra.mxu0 0
        %1978 = vmatprep.subr.bf16.mxu0 0
        %1979 = vmatpush1.bf16.msra.mxu0 0
        %1980 = vmatprep.subr.bf16.mxu0 0
        %1981 = vmatpush1.bf16.msra.mxu0 0
        %1982 = vmatprep.subr.bf16.mxu0 0
        %1983 = vmatpush1.bf16.msra.mxu0 0
        %1984 = vmatprep.subr.bf16.mxu0 0
        %1985 = vmatpush1.bf16.msra.mxu0 0
        %1986 = vmatprep.subr.bf16.mxu0 0
        %1987 = vmatpush1.bf16.msra.mxu0 0
        %1988 = vmatprep.mubr.bf16.mxu0 0
        %1989 = vmatmul.mubr.bf16.gmra.mrb[0].mxu0 %v1846
        %v1990 = vpop.f32.mrb[0].mxu0
        %v1991 = vadd.f32 %v1869, %v1990
        %v1992 = vpop.f32.mrb[0].mxu0
        %v1993 = vadd.f32 %v1873, %v1992
        %v1994 = vpop.f32.mrb[0].mxu0
        %v1995 = vadd.f32 %v1869, %v1994
        %v1996 = vpop.f32.mrb[0].mxu0
        %v1997 = vadd.f32 %v1873, %v1996
        %1998 = vmatprep.mubr.bf16.mxu0 0
        %1999 = vmatmul.mubr.bf16.gmra.mrb[0].mxu0 %v1847
        %v2000 = vpop.f32.mrb[0].mxu0
        %v2001 = vadd.f32 %v1869, %v2000
        %v2002 = vpop.f32.mrb[0].mxu0
        %v2003 = vadd.f32 %v1873, %v2002
        %v2004 = vpop.f32.mrb[0].mxu0
        %v2005 = vadd.f32 %v1869, %v2004
        %v2006 = vpop.f32.mrb[0].mxu0
        %v2007 = vadd.f32 %v1873, %v2006
        %2008 = vdwg.mxu0
        %v2009 = vmax.f32 %v1991, 0.0
        %v2010 = vmax.f32 %v1993, 0.0
        %v2011 = vmax.f32 %v1995, 0.0
        %v2012 = vmax.f32 %v1997, 0.0
        %v2013 = vmax.f32 %v2001, 0.0
        %v2014 = vmax.f32 %v2003, 0.0
        %v2015 = vmax.f32 %v2005, 0.0
        %v2016 = vmax.f32 %v2007, 0.0
        %v2017 = vmul.f32 %v2009, %v594
        %v2018 = vmul.f32 %v2010, %v594
        %v2019 = vmul.f32 %v2011, %v595
        %v2020 = vmul.f32 %v2012, %v595
        %v2021 = vmul.f32 %v2013, %v596
        %v2022 = vmul.f32 %v2014, %v596
        %v2023 = vmul.f32 %v2015, %v597
        %v2024 = vmul.f32 %v2016, %v597
        %v2025 = vadd.f32 %v2017, %v2019
        %v2026 = vadd.f32 %v2025, %v2021
        %v2027 = vsel %vm606, %v2023, 0.0
        %v2028 = vadd.f32 %v2026, %v2027
        %v2029 = vrot.slane %v2028, 4
        %v2030 = vadd.f32 %v2028, %v2029
        %v2031 = vrot.slane %v2030, 2
        %v2032 = vadd.f32 %v2030, %v2031
        %v2033 = vrot.slane %v2032, 1
        %v2034 = vadd.f32 %v2032, %v2033
        %v2035 = vadd.f32 %v2018, %v2020
        %v2036 = vadd.f32 %v2035, %v2022
        %v2037 = vsel %vm606, %v2024, 0.0
        %v2038 = vadd.f32 %v2036, %v2037
        %v2039 = vrot.slane %v2038, 4
        %v2040 = vadd.f32 %v2038, %v2039
        %v2041 = vrot.slane %v2040, 2
        %v2042 = vadd.f32 %v2040, %v2041
        %v2043 = vrot.slane %v2042, 1
        %v2044 = vadd.f32 %v2042, %v2043
        %v2045 = vmul.f32 %v2034, %v1016
        %v2046 = vmul.f32 %v2044, %v1016
        %v2047 = vsub.f32 %v2017, %v2045
        %v2048 = vsub.f32 %v2018, %v2046
        %v2049 = vsub.f32 %v2019, %v2045
        %v2050 = vsub.f32 %v2020, %v2046
        %v2051 = vsub.f32 %v2021, %v2045
        %v2052 = vsub.f32 %v2022, %v2046
        %v2053 = vsub.f32 %v2023, %v2045
        %v2054 = vsub.f32 %v2024, %v2046
        %v2055 = vmul.f32 %v2047, %v594
        %v2056 = vmul.f32 %v2048, %v594
        %v2057 = vmul.f32 %v2049, %v595
        %v2058 = vmul.f32 %v2050, %v595
        %v2059 = vmul.f32 %v2051, %v596
        %v2060 = vmul.f32 %v2052, %v596
        %v2061 = vmul.f32 %v2053, %v597
        %v2062 = vmul.f32 %v2054, %v597
        %v2063 = vmul.f32 %v2055, %v2055
        %v2064 = vmul.f32 %v2056, %v2056
        %v2065 = vmul.f32 %v2057, %v2057
        %v2066 = vmul.f32 %v2058, %v2058
        %v2067 = vmul.f32 %v2059, %v2059
        %v2068 = vmul.f32 %v2060, %v2060
        %v2069 = vmul.f32 %v2061, %v2061
        %v2070 = vmul.f32 %v2062, %v2062
        %v2071 = vadd.f32 %v2063, %v2065
        %v2072 = vadd.f32 %v2071, %v2067
        %v2073 = vsel %vm606, %v2069, 0.0
        %v2074 = vadd.f32 %v2072, %v2073
        %v2075 = vrot.slane %v2074, 4
        %v2076 = vadd.f32 %v2074, %v2075
        %v2077 = vrot.slane %v2076, 2
        %v2078 = vadd.f32 %v2076, %v2077
        %v2079 = vrot.slane %v2078, 1
        %v2080 = vadd.f32 %v2078, %v2079
        %v2081 = vadd.f32 %v2064, %v2066
        %v2082 = vadd.f32 %v2081, %v2068
        %v2083 = vsel %vm606, %v2070, 0.0
        %v2084 = vadd.f32 %v2082, %v2083
        %v2085 = vrot.slane %v2084, 4
        %v2086 = vadd.f32 %v2084, %v2085
        %v2087 = vrot.slane %v2086, 2
        %v2088 = vadd.f32 %v2086, %v2087
        %v2089 = vrot.slane %v2088, 1
        %v2090 = vadd.f32 %v2088, %v2089
        %v2091 = vmul.f32 %v2080, %v1040
        %v2092 = vmul.f32 %v2090, %v1040
        %v2093 = vrsqrt.pop %v2091
        %v2094 = vmul.f32 %v2091, %v2093
        %vm2095 = vcmp.eq.f32.partialorder %v2091, inf
        %v2096 = vsel %vm2095, %v2091, %v2094
        %vm2097 = vcmp.eq.f32.partialorder %v2091, 0.0
        %v2098 = vand.u32 %v2091, 2147483648
        %v2099 = vsel %vm2097, %v2098, %v2096
        %v2100 = vrsqrt.pop %v2092
        %v2101 = vmul.f32 %v2092, %v2100
        %vm2102 = vcmp.eq.f32.partialorder %v2092, inf
        %v2103 = vsel %vm2102, %v2092, %v2101
        %vm2104 = vcmp.eq.f32.partialorder %v2092, 0.0
        %v2105 = vand.u32 %v2092, 2147483648
        %v2106 = vsel %vm2104, %v2105, %v2103
        %v2107 = vpack.c.bf16 %v2045, %v2045
        %v2108 = vpack.c.bf16 %v2046, %v2046
        %v2109 = vpack.c.bf16 %v2099, %v2099
        %v2110 = vpack.c.bf16 %v2106, %v2106
        %v2111 = vld [vmem:[#allocation12] sm:$0xf]
        %v2112 = vld [vmem:[#allocation12 + $0x4] sm:$0xf]
        %v2113 = vld [vmem:[#allocation12 + $0x8] sm:$0xf]
        %v2114 = vld [vmem:[#allocation12 + $0xc] sm:$0xf]
        %v2115 = vld [vmem:[#allocation12 + $0x10] sm:$0xf]
        %v2116 = vld [vmem:[#allocation12 + $0x14] sm:$0xf]
        %v2117 = vld [vmem:[#allocation12 + $0x18] sm:$0xf]
        %v2118 = vld [vmem:[#allocation12 + $0x1c] sm:$0xf]
        %v2119 = vld [vmem:[#allocation12 + $0x20] sm:$0xf]
        %v2120 = vld [vmem:[#allocation12 + $0x24] sm:$0xf]
        %v2121 = vld [vmem:[#allocation12 + $0x28] sm:$0xf]
        %v2122 = vld [vmem:[#allocation12 + $0x2c] sm:$0xf]
        %v2123 = vld [vmem:[#allocation12 + $0x30] sm:$0xf]
        %v2124 = vld [vmem:[#allocation12 + $0x34] sm:$0xf]
        %v2125 = vld [vmem:[#allocation12 + $0x38] sm:$0xf]
        %v2126 = vld [vmem:[#allocation12 + $0x3c] sm:$0xf]
        %v2127 = vld [vmem:[#allocation12 + $0x40] sm:$0xf]
        %v2128 = vld [vmem:[#allocation12 + $0x44] sm:$0xf]
        %v2129 = vld [vmem:[#allocation12 + $0x48] sm:$0xf]
        %v2130 = vld [vmem:[#allocation12 + $0x4c] sm:$0xf]
        %v2131 = vld [vmem:[#allocation12 + $0x50] sm:$0xf]
        %v2132 = vld [vmem:[#allocation12 + $0x54] sm:$0xf]
        %v2133 = vld [vmem:[#allocation12 + $0x58] sm:$0xf]
        %v2134 = vld [vmem:[#allocation12 + $0x5c] sm:$0xf]
        %v2135 = vld [vmem:[#allocation12 + $0x60] sm:$0xf]
        %v2136 = vld [vmem:[#allocation12 + $0x64] sm:$0xf]
        %v2137 = vld [vmem:[#allocation12 + $0x68] sm:$0xf]
        %v2138 = vld [vmem:[#allocation12 + $0x6c] sm:$0xf]
        %v2139 = vld [vmem:[#allocation12 + $0x70] sm:$0xf]
        %v2140 = vld [vmem:[#allocation12 + $0x74] sm:$0xf]
        %v2141 = vld [vmem:[#allocation12 + $0x78] sm:$0xf]
        %v2142 = vld [vmem:[#allocation12 + $0x7c] sm:$0xf]
        %v2143 = vld [vmem:[#allocation12 + $0x80] sm:$0xf]
        %v2144 = vld [vmem:[#allocation12 + $0x84] sm:$0xf]
        %v2145 = vld [vmem:[#allocation12 + $0x88] sm:$0xf]
        %v2146 = vld [vmem:[#allocation12 + $0x8c] sm:$0xf]
        %v2147 = vld [vmem:[#allocation12 + $0x90] sm:$0xf]
        %v2148 = vld [vmem:[#allocation12 + $0x94] sm:$0xf]
        %v2149 = vld [vmem:[#allocation12 + $0x98] sm:$0xf]
        %v2150 = vld [vmem:[#allocation12 + $0x9c] sm:$0xf]
        %v2151 = vld [vmem:[#allocation12 + $0xa0] sm:$0xf]
        %v2152 = vld [vmem:[#allocation12 + $0xa4] sm:$0xf]
        %v2153 = vld [vmem:[#allocation12 + $0xa8] sm:$0xf]
        %v2154 = vld [vmem:[#allocation12 + $0xac] sm:$0xf]
        %v2155 = vld [vmem:[#allocation12 + $0xb0] sm:$0xf]
        %v2156 = vld [vmem:[#allocation12 + $0xb4] sm:$0xf]
        %v2157 = vld [vmem:[#allocation12 + $0xb8] sm:$0xf]
        %v2158 = vld [vmem:[#allocation12 + $0xbc] sm:$0xf]
        %v2159 = vld [vmem:[#allocation12 + $0xc0] sm:$0xf]
        %v2160 = vld [vmem:[#allocation12 + $0xc4] sm:$0xf]
        %v2161 = vld [vmem:[#allocation12 + $0xc8] sm:$0xf]
        %v2162 = vld [vmem:[#allocation12 + $0xcc] sm:$0xf]
        %v2163 = vld [vmem:[#allocation12 + $0xd0] sm:$0xf]
        %v2164 = vld [vmem:[#allocation12 + $0xd4] sm:$0xf]
        %v2165 = vld [vmem:[#allocation12 + $0xd8] sm:$0xf]
        %v2166 = vld [vmem:[#allocation12 + $0xdc] sm:$0xf]
        %v2167 = vld [vmem:[#allocation12 + $0xe0] sm:$0xf]
        %v2168 = vld [vmem:[#allocation12 + $0xe4] sm:$0xf]
        %v2169 = vld [vmem:[#allocation12 + $0xe8] sm:$0xf]
        %v2170 = vld [vmem:[#allocation12 + $0xec] sm:$0xf]
        %v2171 = vld [vmem:[#allocation12 + $0xf0] sm:$0xf]
        %v2172 = vld [vmem:[#allocation12 + $0xf4] sm:$0xf]
        %v2173 = vld [vmem:[#allocation12 + $0xf8] sm:$0xf]
        %v2174 = vld [vmem:[#allocation12 + $0xfc] sm:$0xf]
        %v2175 = vld [vmem:[%s11] sm:$0x1]
        %v2240 = vunpack.c.l.b16 %v2111
        %v2241 = vunpack.c.l.b16 %v2112
        %v2242 = vunpack.c.l.b16 %v2113
        %v2243 = vunpack.c.l.b16 %v2114
        %v2244 = vunpack.c.l.b16 %v2115
        %v2245 = vunpack.c.l.b16 %v2116
        %v2246 = vunpack.c.l.b16 %v2117
        %v2247 = vunpack.c.l.b16 %v2118
        %v2248 = vunpack.c.l.b16 %v2119
        %v2249 = vunpack.c.l.b16 %v2120
        %v2250 = vunpack.c.l.b16 %v2121
        %v2251 = vunpack.c.l.b16 %v2122
        %v2252 = vunpack.c.l.b16 %v2123
        %v2253 = vunpack.c.l.b16 %v2124
        %v2254 = vunpack.c.l.b16 %v2125
        %v2255 = vunpack.c.l.b16 %v2126
        %v2256 = vunpack.c.l.b16 %v2127
        %v2257 = vunpack.c.l.b16 %v2128
        %v2258 = vunpack.c.l.b16 %v2129
        %v2259 = vunpack.c.l.b16 %v2130
        %v2260 = vunpack.c.l.b16 %v2131
        %v2261 = vunpack.c.l.b16 %v2132
        %v2262 = vunpack.c.l.b16 %v2133
        %v2263 = vunpack.c.l.b16 %v2134
        %v2264 = vunpack.c.l.b16 %v2135
        %v2265 = vunpack.c.l.b16 %v2136
        %v2266 = vunpack.c.l.b16 %v2137
        %v2267 = vunpack.c.l.b16 %v2138
        %v2268 = vunpack.c.l.b16 %v2139
        %v2269 = vunpack.c.l.b16 %v2140
        %v2270 = vunpack.c.l.b16 %v2141
        %v2271 = vunpack.c.l.b16 %v2142
        %v2272 = vunpack.c.l.b16 %v2143
        %v2273 = vunpack.c.l.b16 %v2144
        %v2274 = vunpack.c.l.b16 %v2145
        %v2275 = vunpack.c.l.b16 %v2146
        %v2276 = vunpack.c.l.b16 %v2147
        %v2277 = vunpack.c.l.b16 %v2148
        %v2278 = vunpack.c.l.b16 %v2149
        %v2279 = vunpack.c.l.b16 %v2150
        %v2280 = vunpack.c.l.b16 %v2151
        %v2281 = vunpack.c.l.b16 %v2152
        %v2282 = vunpack.c.l.b16 %v2153
        %v2283 = vunpack.c.l.b16 %v2154
        %v2284 = vunpack.c.l.b16 %v2155
        %v2285 = vunpack.c.l.b16 %v2156
        %v2286 = vunpack.c.l.b16 %v2157
        %v2287 = vunpack.c.l.b16 %v2158
        %v2288 = vunpack.c.l.b16 %v2159
        %v2289 = vunpack.c.l.b16 %v2160
        %v2290 = vunpack.c.l.b16 %v2161
        %v2291 = vunpack.c.l.b16 %v2162
        %v2292 = vunpack.c.l.b16 %v2163
        %v2293 = vunpack.c.l.b16 %v2164
        %v2294 = vunpack.c.l.b16 %v2165
        %v2295 = vunpack.c.l.b16 %v2166
        %v2296 = vunpack.c.l.b16 %v2167
        %v2297 = vunpack.c.l.b16 %v2168
        %v2298 = vunpack.c.l.b16 %v2169
        %v2299 = vunpack.c.l.b16 %v2170
        %v2300 = vunpack.c.l.b16 %v2171
        %v2301 = vunpack.c.l.b16 %v2172
        %v2302 = vunpack.c.l.b16 %v2173
        %v2303 = vunpack.c.l.b16 %v2174
        %v2304 = vpack.c.b16 %v2241, %v2240
        %v2305 = vpack.c.b16 %v2243, %v2242
        %v2306 = vpack.c.b16 %v2245, %v2244
        %v2307 = vpack.c.b16 %v2247, %v2246
        %v2308 = vpack.c.b16 %v2249, %v2248
        %v2309 = vpack.c.b16 %v2251, %v2250
        %v2310 = vpack.c.b16 %v2253, %v2252
        %v2311 = vpack.c.b16 %v2255, %v2254
        %v2312 = vpack.c.b16 %v2257, %v2256
        %v2313 = vpack.c.b16 %v2259, %v2258
        %v2314 = vpack.c.b16 %v2261, %v2260
        %v2315 = vpack.c.b16 %v2263, %v2262
        %v2316 = vpack.c.b16 %v2265, %v2264
        %v2317 = vpack.c.b16 %v2267, %v2266
        %v2318 = vpack.c.b16 %v2269, %v2268
        %v2319 = vpack.c.b16 %v2271, %v2270
        %v2320 = vpack.c.b16 %v2273, %v2272
        %v2321 = vpack.c.b16 %v2275, %v2274
        %v2322 = vpack.c.b16 %v2277, %v2276
        %v2323 = vpack.c.b16 %v2279, %v2278
        %v2324 = vpack.c.b16 %v2281, %v2280
        %v2325 = vpack.c.b16 %v2283, %v2282
        %v2326 = vpack.c.b16 %v2285, %v2284
        %v2327 = vpack.c.b16 %v2287, %v2286
        %v2328 = vpack.c.b16 %v2289, %v2288
        %v2329 = vpack.c.b16 %v2291, %v2290
        %v2330 = vpack.c.b16 %v2293, %v2292
        %v2331 = vpack.c.b16 %v2295, %v2294
        %v2332 = vpack.c.b16 %v2297, %v2296
        %v2333 = vpack.c.b16 %v2299, %v2298
        %v2334 = vpack.c.b16 %v2301, %v2300
        %v2335 = vpack.c.b16 %v2303, %v2302
        %2368 = vmatprep.subr.bf16.mxu0 0
        %2369 = vmatpush1.bf16.msra.mxu0 %v2304
        %2370 = vmatprep.subr.bf16.mxu0 0
        %2371 = vmatpush1.bf16.msra.mxu0 %v2305
        %2372 = vmatprep.subr.bf16.mxu0 0
        %2373 = vmatpush1.bf16.msra.mxu0 %v2306
        %2374 = vmatprep.subr.bf16.mxu0 0
        %2375 = vmatpush1.bf16.msra.mxu0 %v2307
        %2376 = vmatprep.subr.bf16.mxu0 0
        %2377 = vmatpush1.bf16.msra.mxu0 %v2308
        %2378 = vmatprep.subr.bf16.mxu0 0
        %2379 = vmatpush1.bf16.msra.mxu0 %v2309
        %2380 = vmatprep.subr.bf16.mxu0 0
        %2381 = vmatpush1.bf16.msra.mxu0 %v2310
        %2382 = vmatprep.subr.bf16.mxu0 0
        %2383 = vmatpush1.bf16.msra.mxu0 %v2311
        %2384 = vmatprep.subr.bf16.mxu0 0
        %2385 = vmatpush1.bf16.msra.mxu0 %v2312
        %2386 = vmatprep.subr.bf16.mxu0 0
        %2387 = vmatpush1.bf16.msra.mxu0 %v2313
        %2388 = vmatprep.subr.bf16.mxu0 0
        %2389 = vmatpush1.bf16.msra.mxu0 %v2314
        %2390 = vmatprep.subr.bf16.mxu0 0
        %2391 = vmatpush1.bf16.msra.mxu0 %v2315
        %2392 = vmatprep.subr.bf16.mxu0 0
        %2393 = vmatpush1.bf16.msra.mxu0 %v2316
        %2394 = vmatprep.subr.bf16.mxu0 0
        %2395 = vmatpush1.bf16.msra.mxu0 %v2317
        %2396 = vmatprep.subr.bf16.mxu0 0
        %2397 = vmatpush1.bf16.msra.mxu0 %v2318
        %2398 = vmatprep.subr.bf16.mxu0 0
        %2399 = vmatpush1.bf16.msra.mxu0 %v2319
        %2400 = vmatprep.mubr.bf16.mxu0 %v2108
        %2401 = vmatmul.mubr.bf16.gmra.mrb[0].mxu0 %v2107
        %v2402 = vpop.f32.mrb[0].mxu0
        %v2403 = vadd.f32 %v2175, %v2402
        %v2404 = vpop.f32.mrb[0].mxu0
        %v2405 = vpop.f32.mrb[0].mxu0
        %v2406 = vpop.f32.mrb[0].mxu0
        %2407 = vdwg.mxu0
        %2408 = vmatprep.subr.bf16.mxu0 0
        %2409 = vmatpush1.bf16.msra.mxu0 %v2320
        %2410 = vmatprep.subr.bf16.mxu0 0
        %2411 = vmatpush1.bf16.msra.mxu0 %v2321
        %2412 = vmatprep.subr.bf16.mxu0 0
        %2413 = vmatpush1.bf16.msra.mxu0 %v2322
        %2414 = vmatprep.subr.bf16.mxu0 0
        %2415 = vmatpush1.bf16.msra.mxu0 %v2323
        %2416 = vmatprep.subr.bf16.mxu0 0
        %2417 = vmatpush1.bf16.msra.mxu0 %v2324
        %2418 = vmatprep.subr.bf16.mxu0 0
        %2419 = vmatpush1.bf16.msra.mxu0 %v2325
        %2420 = vmatprep.subr.bf16.mxu0 0
        %2421 = vmatpush1.bf16.msra.mxu0 %v2326
        %2422 = vmatprep.subr.bf16.mxu0 0
        %2423 = vmatpush1.bf16.msra.mxu0 %v2327
        %2424 = vmatprep.subr.bf16.mxu0 0
        %2425 = vmatpush1.bf16.msra.mxu0 %v2328
        %2426 = vmatprep.subr.bf16.mxu0 0
        %2427 = vmatpush1.bf16.msra.mxu0 %v2329
        %2428 = vmatprep.subr.bf16.mxu0 0
        %2429 = vmatpush1.bf16.msra.mxu0 %v2330
        %2430 = vmatprep.subr.bf16.mxu0 0
        %2431 = vmatpush1.bf16.msra.mxu0 %v2331
        %2432 = vmatprep.subr.bf16.mxu0 0
        %2433 = vmatpush1.bf16.msra.mxu0 %v2332
        %2434 = vmatprep.subr.bf16.mxu0 0
        %2435 = vmatpush1.bf16.msra.mxu0 %v2333
        %2436 = vmatprep.subr.bf16.mxu0 0
        %2437 = vmatpush1.bf16.msra.mxu0 %v2334
        %2438 = vmatprep.subr.bf16.mxu0 0
        %2439 = vmatpush1.bf16.msra.mxu0 %v2335
        %2440 = vmatprep.mubr.bf16.mxu0 %v2110
        %2441 = vmatmul.mubr.bf16.gmra.mrb[0].mxu0 %v2109
        %v2442 = vpop.f32.mrb[0].mxu0
        %v2443 = vadd.f32 %v2403, %v2442
        %v2444 = vpop.f32.mrb[0].mxu0
        %v2445 = vpop.f32.mrb[0].mxu0
        %v2446 = vpop.f32.mrb[0].mxu0
        %2447 = vdwg.mxu0
        %v2448 = vpack.c.bf16 %v2443, %v2443
        %v2449 = vld [vmem:[#allocation13] sm:$0xf]
        %v2450 = vld [vmem:[#allocation13 + $0x4] sm:$0xf]
        %v2451 = vld [vmem:[#allocation13 + $0x8] sm:$0xf]
        %v2452 = vld [vmem:[#allocation13 + $0xc] sm:$0xf]
        %v2453 = vld [vmem:[#allocation13 + $0x10] sm:$0xf]
        %v2454 = vld [vmem:[#allocation13 + $0x14] sm:$0xf]
        %v2455 = vld [vmem:[#allocation13 + $0x18] sm:$0xf]
        %v2456 = vld [vmem:[#allocation13 + $0x1c] sm:$0xf]
        %v2457 = vld [vmem:[#allocation13 + $0x20] sm:$0xf]
        %v2458 = vld [vmem:[#allocation13 + $0x24] sm:$0xf]
        %v2459 = vld [vmem:[#allocation13 + $0x28] sm:$0xf]
        %v2460 = vld [vmem:[#allocation13 + $0x2c] sm:$0xf]
        %v2461 = vld [vmem:[#allocation13 + $0x30] sm:$0xf]
        %v2462 = vld [vmem:[#allocation13 + $0x34] sm:$0xf]
        %v2463 = vld [vmem:[#allocation13 + $0x38] sm:$0xf]
        %v2464 = vld [vmem:[#allocation13 + $0x3c] sm:$0xf]
        %v2465 = vld [vmem:[%s13] sm:$0x1]
        %v2482 = vunpack.c.l.b16 %v2449
        %v2483 = vunpack.c.l.b16 %v2450
        %v2484 = vunpack.c.l.b16 %v2451
        %v2485 = vunpack.c.l.b16 %v2452
        %v2486 = vunpack.c.l.b16 %v2453
        %v2487 = vunpack.c.l.b16 %v2454
        %v2488 = vunpack.c.l.b16 %v2455
        %v2489 = vunpack.c.l.b16 %v2456
        %v2490 = vunpack.c.l.b16 %v2457
        %v2491 = vunpack.c.l.b16 %v2458
        %v2492 = vunpack.c.l.b16 %v2459
        %v2493 = vunpack.c.l.b16 %v2460
        %v2494 = vunpack.c.l.b16 %v2461
        %v2495 = vunpack.c.l.b16 %v2462
        %v2496 = vunpack.c.l.b16 %v2463
        %v2497 = vunpack.c.l.b16 %v2464
        %v2498 = vpack.c.b16 %v2483, %v2482
        %v2499 = vpack.c.b16 %v2485, %v2484
        %v2500 = vpack.c.b16 %v2487, %v2486
        %v2501 = vpack.c.b16 %v2489, %v2488
        %v2502 = vpack.c.b16 %v2491, %v2490
        %v2503 = vpack.c.b16 %v2493, %v2492
        %v2504 = vpack.c.b16 %v2495, %v2494
        %v2505 = vpack.c.b16 %v2497, %v2496
        %2514 = vmatprep.subr.bf16.mxu0 0
        %2515 = vmatpush1.bf16.msra.mxu0 %v2498
        %2516 = vmatprep.subr.bf16.mxu0 0
        %2517 = vmatpush1.bf16.msra.mxu0 %v2499
        %2518 = vmatprep.subr.bf16.mxu0 0
        %2519 = vmatpush1.bf16.msra.mxu0 %v2500
        %2520 = vmatprep.subr.bf16.mxu0 0
        %2521 = vmatpush1.bf16.msra.mxu0 %v2501
        %2522 = vmatprep.subr.bf16.mxu0 0
        %2523 = vmatpush1.bf16.msra.mxu0 %v2502
        %2524 = vmatprep.subr.bf16.mxu0 0
        %2525 = vmatpush1.bf16.msra.mxu0 %v2503
        %2526 = vmatprep.subr.bf16.mxu0 0
        %2527 = vmatpush1.bf16.msra.mxu0 %v2504
        %2528 = vmatprep.subr.bf16.mxu0 0
        %2529 = vmatpush1.bf16.msra.mxu0 %v2505
        %2530 = vmatprep.subr.bf16.mxu0 0
        %2531 = vmatpush1.bf16.msra.mxu0 0
        %2532 = vmatprep.subr.bf16.mxu0 0
        %2533 = vmatpush1.bf16.msra.mxu0 0
        %2534 = vmatprep.subr.bf16.mxu0 0
        %2535 = vmatpush1.bf16.msra.mxu0 0
        %2536 = vmatprep.subr.bf16.mxu0 0
        %2537 = vmatpush1.bf16.msra.mxu0 0
        %2538 = vmatprep.subr.bf16.mxu0 0
        %2539 = vmatpush1.bf16.msra.mxu0 0
        %2540 = vmatprep.subr.bf16.mxu0 0
        %2541 = vmatpush1.bf16.msra.mxu0 0
        %2542 = vmatprep.subr.bf16.mxu0 0
        %2543 = vmatpush1.bf16.msra.mxu0 0
        %2544 = vmatprep.subr.bf16.mxu0 0
        %2545 = vmatpush1.bf16.msra.mxu0 0
        %2546 = vmatprep.mubr.bf16.mxu0 0
        %2547 = vmatmul.mubr.bf16.gmra.mrb[0].mxu0 %v2448
        %v2548 = vpop.f32.mrb[0].mxu0
        %v2549 = vadd.f32 %v2465, %v2548
        %v2550 = vpop.f32.mrb[0].mxu0
        %v2551 = vpop.f32.mrb[0].mxu0
        %v2552 = vpop.f32.mrb[0].mxu0
        %2553 = vdwg.mxu0
        %2554 = vst [vmem:[%s564] sm:$0x1] %v2443
        %2555 = vst [vmem:[%s558] sm:$0x1] %v2549
        %s2556 = sand.u32 %s329, 1
        %s2557 = scalar_lea.sflag [#allocation6], %s2556
        %s2558 = sand.u32 %s329, 1
        %s2559 = scalar_lea.vmem [#allocation15], %s2558
        %s2560 = sand.u32 %s355, 1
        %s2561 = scalar_lea.sflag [#allocation17], %s2560
        %s2562 = sand.u32 %s355, 1
        %s2563 = scalar_lea.vmem [#allocation16], %s2562
        // Predicated region
        $region97: #{forward.1} parent=71 // pred_check
          %p2564 = pneg %p339
        $region98: #{forward.1} parent=71 // pred_check_branch
          %2566 = sbr.rel (%p2564) target = $region100
        $region99: #{forward.1} parent=71 // pred_region
          %s2568 = ssub.s32 16, 16
          %2569 = vsyncadd %s2557, %s2568
          %s2570 = smul.addr %s43, 16
          %s2571 = scalar_lea.hbm %s14, %s2570
          %s2573 = sshll.u32 %s2559, 4
          %s2574 = int_to_ptr.vmem [resolvable:$true] %s2573
          %2576 = dma.vmem_to_hbm [thread:$0]  %s2574, 16, %s2571, %s2557
        $region100: #{forward.1} parent=71 // pred_fallthru
          _
        // Predicated region
        $region101: #{forward.1} parent=71 // pred_check
          %p2577 = pneg %p365
        $region102: #{forward.1} parent=71 // pred_check_branch
          %2579 = sbr.rel (%p2577) target = $region104
        $region103: #{forward.1} parent=71 // pred_region
          %s2581 = ssub.s32 16, 16
          %2582 = vsyncadd %s2561, %s2581
          %s2583 = smul.addr %s43, 16
          %s2584 = scalar_lea.hbm %s15, %s2583
          %s2586 = sshll.u32 %s2563, 4
          %s2587 = int_to_ptr.vmem [resolvable:$true] %s2586
          %2589 = dma.vmem_to_hbm [thread:$0]  %s2587, 16, %s2584, %s2561
        $region104: #{forward.1} parent=71 // pred_fallthru
          _
      $region72: #{forward.1} parent=5 // pred_fallthru
        _
      %p2590 = scmp.le.s32.totalorder 2, %s38
      // Predicated region
      $region105: #{forward.1} parent=5 // pred_check
        %p2591 = pneg %p2590
      $region106: #{forward.1} parent=5 // pred_check_branch
        %2593 = sbr.rel (%p2591) target = $region108
      $region107: #{forward.1} parent=5 // pred_region
        %s2594 = ssub.s32 %s38, 2
        // Predicated region
        $region109: #{forward.1} parent=107 // pred_check
          %p2595 = pneg %p345
        $region110: #{forward.1} parent=107 // pred_check_branch
          %2597 = sbr.rel (%p2595) target = $region112
        $region111: #{forward.1} parent=107 // pred_region
          %s2598 = sand.u32 %s330, 1
          %s2599 = scalar_lea.sflag [#allocation6], %s2598
          %s2600 = sand.u32 %s330, 1
          %s2601 = scalar_lea.vmem [#allocation15], %s2600
          %2602 = dma.done %s2599, 16
        $region112: #{forward.1} parent=107 // pred_fallthru
          _
        // Predicated region
        $region113: #{forward.1} parent=107 // pred_check
          %p2603 = pneg %p371
        $region114: #{forward.1} parent=107 // pred_check_branch
          %2605 = sbr.rel (%p2603) target = $region116
        $region115: #{forward.1} parent=107 // pred_region
          %s2606 = sand.u32 %s356, 1
          %s2607 = scalar_lea.sflag [#allocation17], %s2606
          %s2608 = sand.u32 %s356, 1
          %s2609 = scalar_lea.vmem [#allocation16], %s2608
          %2610 = dma.done %s2607, 16
        $region116: #{forward.1} parent=107 // pred_fallthru
          _
      $region108: #{forward.1} parent=5 // pred_fallthru
        _
    $region6: #{forward.1} parent=1 // loop_footer
      %s42 = sadd.s32 1, %s38
    $region7: #{forward.1} parent=1 // loop_footer_branch
      %37 = sbr.rel target = $region3
    $region8: #{forward.1} parent=1 // loop_exit
      _
    %2611 = vsyncpa [#allocation5], 1
    %s2612 = scalar_lea.sflag [#allocation5], 1
    %2613 = vsyncpa %s2612, 1
    %2614 = vsyncpa [#allocation8], 1
    %2615 = vsyncpa [#allocation11], 1
    %2616 = vsyncpa [#allocation14], 1
    %2617 = vsyncpa [#allocation6], 1
    %s2618 = scalar_lea.sflag [#allocation6], 1
    %2619 = vsyncpa %s2618, 1
    %2620 = vsyncpa [#allocation17], 1
    %s2621 = scalar_lea.sflag [#allocation17], 1
    %2622 = vsyncpa %s2621, 1

</llo_original>
